<compile_context>
chip_gen: v6e
topology: v6e:2x2x1
jax: 0.10.0
libtpu: 0.0.40
codegen_flags: <defaults>
</compile_context>

<pallas_src>
import functools

import jax
import jax.numpy as jnp
from jax.experimental import pallas as pl
from jax.experimental.pallas import tpu as pltpu


def _rnn_kernel(x_ref, w_ih_ref, w_hh_ref, b_ref, w_fc_ref, b_fc_ref, out_ref,
                proj_ref, act_ref, *, num_layers, seq_len, batch, indim, hdim):
    """x_ref:    (T*B, indim)  time-major flattened input
       w_ih_ref: (L, P, hdim)  P = max(indim, hdim); layer 0 uses rows [:indim]
       w_hh_ref: (L, hdim, hdim)
       b_ref:    (L, 2, hdim)  [l,0]=b_ih, [l,1]=b_hh
       w_fc_ref: (hdim, outdim), b_fc_ref: (1, outdim)
       proj_ref / act_ref: (T*B, hdim) VMEM scratch slabs."""
    B = batch
    T = seq_len

    h = None
    for l in range(num_layers):
        in_feat = indim if l == 0 else hdim
        is_last = (l == num_layers - 1)

        # ---- hoisted input projection: one big matmul per layer + fused bias ----
        inp = x_ref[...] if l == 0 else act_ref[...]          # (T*B, in_feat)
        w_ih = w_ih_ref[l][:in_feat, :]                       # (in_feat, hdim)
        b_l = b_ref[l]                                        # (2, hdim)
        bias = b_l[0:1, :] + b_l[1:2, :]                      # (1, hdim), added once
        proj_ref[...] = (jnp.dot(inp, w_ih, preferred_element_type=jnp.float32)
                         + bias)

        # ---- serial recurrence: only h @ W_hh on the critical path ----
        w_hh = w_hh_ref[l]                                    # (hdim, hdim)
        h = jnp.zeros((B, hdim), dtype=jnp.float32)
        for t in range(T):
            pre = (proj_ref[pl.ds(t * B, B), :]
                   + jnp.dot(h, w_hh, preferred_element_type=jnp.float32))
            h = jnp.tanh(pre)
            if not is_last:
                act_ref[pl.ds(t * B, B), :] = h               # feed next layer

    # ---- final FC fused directly after the last recurrent step ----
    pred = jnp.dot(h, w_fc_ref[...],
                   preferred_element_type=jnp.float32) + b_fc_ref[...]
    out_ref[...] = pred.astype(out_ref.dtype)


def init_params(key, indim, hdim, outdim, num_layers):
    """PyTorch-style init: U(-1/sqrt(hdim), 1/sqrt(hdim)); weights stored (in, out)."""
    params = []
    bound = 1.0 / jnp.sqrt(jnp.float32(hdim))
    for l in range(num_layers):
        in_feat = indim if l == 0 else hdim
        key, k1, k2, k3, k4 = jax.random.split(key, 5)
        w_ih = jax.random.uniform(k1, (in_feat, hdim), jnp.float32, -bound, bound)
        w_hh = jax.random.uniform(k2, (hdim, hdim), jnp.float32, -bound, bound)
        b_ih = jax.random.uniform(k3, (1, hdim), jnp.float32, -bound, bound)
        b_hh = jax.random.uniform(k4, (1, hdim), jnp.float32, -bound, bound)
        params += [w_ih, w_hh, b_ih, b_hh]
    key, k5, k6 = jax.random.split(key, 3)
    w_fc = jax.random.uniform(k5, (hdim, outdim), jnp.float32, -bound, bound)
    b_fc = jax.random.uniform(k6, (1, outdim), jnp.float32, -bound, bound)
    params += [w_fc, b_fc]
    return params


def pack_params(params, *, indim, hdim, num_layers):
    """Pack 4L+2 tiny arrays into 5 slabs (fewer DMA descriptors / VMEM buffers)."""
    P = max(indim, hdim)
    w_ih_stack = jnp.zeros((num_layers, P, hdim), jnp.float32)
    w_hh_stack = jnp.zeros((num_layers, hdim, hdim), jnp.float32)
    b_stack = jnp.zeros((num_layers, 2, hdim), jnp.float32)
    for l in range(num_layers):
        w_ih, w_hh, b_ih, b_hh = params[4 * l: 4 * l + 4]
        in_feat = indim if l == 0 else hdim
        w_ih_stack = w_ih_stack.at[l, :in_feat, :].set(w_ih)
        w_hh_stack = w_hh_stack.at[l].set(w_hh)
        b_stack = b_stack.at[l, 0].set(b_ih[0])
        b_stack = b_stack.at[l, 1].set(b_hh[0])
    w_fc, b_fc = params[-2], params[-1]
    return (w_ih_stack, w_hh_stack, b_stack, w_fc, b_fc)


def recurrent_nn_forward(data, packed, *, indim, hdim, outdim, num_layers, seq_len):
    """data: (B, 1, T, indim) float32 -> prediction: (B, outdim) float32."""
    B = data.shape[0]
    T = seq_len
    # Glue (plain JAX, layout only): squeeze(1), go time-major, flatten to 2-D so
    # all in-kernel matmuls are plain 2-D dots and per-step reads are row slices.
    x = jnp.squeeze(data, axis=1)                               # (B, T, indim)
    x = jnp.transpose(x, (1, 0, 2)).reshape(T * B, indim)       # (T*B, indim)

    w_ih_stack, w_hh_stack, b_stack, w_fc, b_fc = packed

    kernel = functools.partial(_rnn_kernel, num_layers=num_layers, seq_len=T,
                               batch=B, indim=indim, hdim=hdim)

    vmem = pl.BlockSpec(memory_space=pltpu.MemorySpace.VMEM)
    return pl.pallas_call(
        kernel,
        out_shape=jax.ShapeDtypeStruct((B, outdim), jnp.float32),
        in_specs=[vmem] * 6,
        out_specs=vmem,
        scratch_shapes=[pltpu.VMEM((T * B, hdim), jnp.float32),   # proj slab
                        pltpu.VMEM((T * B, hdim), jnp.float32)],  # act slab
        compiler_params=pltpu.CompilerParams(vmem_limit_bytes=32 * 1024 * 1024),
    )(x, w_ih_stack, w_hh_stack, b_stack, w_fc, b_fc)


def _reference_forward(data, params, *, num_layers, seq_len, hdim):
    """Pure-JAX reference (same math) for a sanity check."""
    x = jnp.squeeze(data, axis=1)
    xs = [x[:, t, :] for t in range(seq_len)]
    for l in range(num_layers):
        w_ih, w_hh, b_ih, b_hh = params[4 * l: 4 * l + 4]
        h = jnp.zeros((x.shape[0], hdim), jnp.float32)
        outs = []
        for t in range(seq_len):
            h = jnp.tanh(xs[t] @ w_ih + h @ w_hh + b_ih + b_hh)
            outs.append(h)
        xs = outs
    w_fc, b_fc = params[-2], params[-1]
    return xs[-1] @ w_fc + b_fc


if __name__ == "__main__":
    # Small shapes consistent with the module's forward.
    B, T = 2, 8
    indim, hdim, outdim, num_layers = 16, 32, 4, 2

    key = jax.random.PRNGKey(0)
    key, kdata, kparam = jax.random.split(key, 3)
    data = jax.random.normal(kdata, (B, 1, T, indim), jnp.float32)
    params = init_params(kparam, indim, hdim, outdim, num_layers)
    packed = pack_params(params, indim=indim, hdim=hdim, num_layers=num_layers)

    pred = recurrent_nn_forward(data, packed, indim=indim, hdim=hdim,
                                outdim=outdim, num_layers=num_layers, seq_len=T)
    pred = jax.block_until_ready(pred)

    ref = _reference_forward(data, params, num_layers=num_layers, seq_len=T, hdim=hdim)
    assert pred.shape == (B, outdim)
    assert jnp.allclose(pred, ref, atol=1e-5, rtol=1e-5), "mismatch vs JAX reference"

    print("KERNEL_OK")
</pallas_src>

<mosaic_0001>
module attributes {stable_mosaic.version = 11 : i64} {
  func.func @_rnn_kernel(%arg0: memref<16x16xf32, #tpu.memory_space<vmem>>, %arg1: memref<2x32x32xf32, #tpu.memory_space<vmem>>, %arg2: memref<2x32x32xf32, #tpu.memory_space<vmem>>, %arg3: memref<2x2x32xf32, #tpu.memory_space<vmem>>, %arg4: memref<32x4xf32, #tpu.memory_space<vmem>>, %arg5: memref<1x4xf32, #tpu.memory_space<vmem>>, %arg6: memref<2x4xf32, #tpu.memory_space<vmem>>, %arg7: memref<16x32xf32, #tpu.memory_space<vmem>>, %arg8: memref<16x32xf32, #tpu.memory_space<vmem>>) attributes {dimension_semantics = [], scalar_prefetch = 0 : i64, scratch_operands = 2 : i64, tpu.core_type = #tpu.core_type<tc>} {
    %c0 = arith.constant 0 : index
    %c0_0 = arith.constant 0 : index
    %0 = vector.load %arg0[%c0, %c0_0] : memref<16x16xf32, #tpu.memory_space<vmem>>, vector<16x16xf32>
    %c0_1 = arith.constant 0 : index
    %c0_2 = arith.constant 0 : index
    %c0_3 = arith.constant 0 : index
    %1 = vector.load %arg1[%c0_1, %c0_2, %c0_3] : memref<2x32x32xf32, #tpu.memory_space<vmem>>, vector<1x32x32xf32>
    %2 = vector.shape_cast %1 : vector<1x32x32xf32> to vector<32x32xf32>
    %3 = vector.extract_strided_slice %2 {offsets = [0, 0], sizes = [16, 32], strides = [1, 1]} : vector<32x32xf32> to vector<16x32xf32>
    %c0_4 = arith.constant 0 : index
    %c0_5 = arith.constant 0 : index
    %c0_6 = arith.constant 0 : index
    %4 = vector.load %arg3[%c0_4, %c0_5, %c0_6] : memref<2x2x32xf32, #tpu.memory_space<vmem>>, vector<1x2x32xf32>
    %5 = vector.shape_cast %4 : vector<1x2x32xf32> to vector<2x32xf32>
    %6 = vector.extract_strided_slice %5 {offsets = [0, 0], sizes = [1, 32], strides = [1, 1]} : vector<2x32xf32> to vector<1x32xf32>
    %7 = vector.extract_strided_slice %5 {offsets = [1, 0], sizes = [1, 32], strides = [1, 1]} : vector<2x32xf32> to vector<1x32xf32>
    %8 = arith.addf %6, %7 : vector<1x32xf32>
    %cst = arith.constant dense<0.000000e+00> : vector<16x32xf32>
    %9 = tpu.matmul %0, %3, %cst {dimension_numbers = #tpu.dot_dimension_numbers<[1], [0], [0], [1], [0, 0, 1, 1], [], []>} : vector<16x16xf32>, vector<16x32xf32>, vector<16x32xf32> -> vector<16x32xf32>
    %10 = vector.broadcast %8 : vector<1x32xf32> to vector<16x32xf32>
    %11 = arith.addf %9, %10 : vector<16x32xf32>
    %c0_7 = arith.constant 0 : index
    %c0_8 = arith.constant 0 : index
    %12 = vector.load %arg7[%c0_7, %c0_8] : memref<16x32xf32, #tpu.memory_space<vmem>>, vector<16x32xf32>
    tpu.vector_store %arg7[%c0_7, %c0_8], %11 {strides = array<i32>} : memref<16x32xf32, #tpu.memory_space<vmem>>, vector<16x32xf32>,
    %c0_9 = arith.constant 0 : index
    %c0_10 = arith.constant 0 : index
    %c0_11 = arith.constant 0 : index
    %13 = vector.load %arg2[%c0_9, %c0_10, %c0_11] : memref<2x32x32xf32, #tpu.memory_space<vmem>>, vector<1x32x32xf32>
    %14 = vector.shape_cast %13 : vector<1x32x32xf32> to vector<32x32xf32>
    %cst_12 = arith.constant 0.000000e+00 : f32
    %15 = vector.broadcast %cst_12 : f32 to vector<2x32xf32>
    %c0_13 = arith.constant 0 : index
    %c0_14 = arith.constant 0 : index
    %16 = vector.load %arg7[%c0_13, %c0_14] : memref<16x32xf32, #tpu.memory_space<vmem>>, vector<2x32xf32>
    %cst_15 = arith.constant dense<0.000000e+00> : vector<2x32xf32>
    %17 = tpu.matmul %15, %14, %cst_15 {dimension_numbers = #tpu.dot_dimension_numbers<[1], [0], [0], [1], [0, 0, 1, 1], [], []>} : vector<2x32xf32>, vector<32x32xf32>, vector<2x32xf32> -> vector<2x32xf32>
    %18 = arith.addf %16, %17 : vector<2x32xf32>
    %19 = math.tanh %18 : vector<2x32xf32>
    %c0_16 = arith.constant 0 : index
    %c0_17 = arith.constant 0 : index
    %20 = vector.load %arg8[%c0_16, %c0_17] : memref<16x32xf32, #tpu.memory_space<vmem>>, vector<2x32xf32>
    tpu.vector_store %arg8[%c0_16, %c0_17], %19 {strides = array<i32>} : memref<16x32xf32, #tpu.memory_space<vmem>>, vector<2x32xf32>,
    %c2 = arith.constant 2 : index
    %c0_18 = arith.constant 0 : index
    %21 = vector.load %arg7[%c2, %c0_18] : memref<16x32xf32, #tpu.memory_space<vmem>>, vector<2x32xf32>
    %cst_19 = arith.constant dense<0.000000e+00> : vector<2x32xf32>
    %22 = tpu.matmul %19, %14, %cst_19 {dimension_numbers = #tpu.dot_dimension_numbers<[1], [0], [0], [1], [0, 0, 1, 1], [], []>} : vector<2x32xf32>, vector<32x32xf32>, vector<2x32xf32> -> vector<2x32xf32>
    %23 = arith.addf %21, %22 : vector<2x32xf32>
    %24 = math.tanh %23 : vector<2x32xf32>
    %c2_20 = arith.constant 2 : index
    %c0_21 = arith.constant 0 : index
    %25 = vector.load %arg8[%c2_20, %c0_21] : memref<16x32xf32, #tpu.memory_space<vmem>>, vector<2x32xf32>
    tpu.vector_store %arg8[%c2_20, %c0_21], %24 {strides = array<i32>} : memref<16x32xf32, #tpu.memory_space<vmem>>, vector<2x32xf32>,
    %c4 = arith.constant 4 : index
    %c0_22 = arith.constant 0 : index
    %26 = vector.load %arg7[%c4, %c0_22] : memref<16x32xf32, #tpu.memory_space<vmem>>, vector<2x32xf32>
    %cst_23 = arith.constant dense<0.000000e+00> : vector<2x32xf32>
    %27 = tpu.matmul %24, %14, %cst_23 {dimension_numbers = #tpu.dot_dimension_numbers<[1], [0], [0], [1], [0, 0, 1, 1], [], []>} : vector<2x32xf32>, vector<32x32xf32>, vector<2x32xf32> -> vector<2x32xf32>
    %28 = arith.addf %26, %27 : vector<2x32xf32>
    %29 = math.tanh %28 : vector<2x32xf32>
    %c4_24 = arith.constant 4 : index
    %c0_25 = arith.constant 0 : index
    %30 = vector.load %arg8[%c4_24, %c0_25] : memref<16x32xf32, #tpu.memory_space<vmem>>, vector<2x32xf32>
    tpu.vector_store %arg8[%c4_24, %c0_25], %29 {strides = array<i32>} : memref<16x32xf32, #tpu.memory_space<vmem>>, vector<2x32xf32>,
    %c6 = arith.constant 6 : index
    %c0_26 = arith.constant 0 : index
    %31 = vector.load %arg7[%c6, %c0_26] : memref<16x32xf32, #tpu.memory_space<vmem>>, vector<2x32xf32>
    %cst_27 = arith.constant dense<0.000000e+00> : vector<2x32xf32>
    %32 = tpu.matmul %29, %14, %cst_27 {dimension_numbers = #tpu.dot_dimension_numbers<[1], [0], [0], [1], [0, 0, 1, 1], [], []>} : vector<2x32xf32>, vector<32x32xf32>, vector<2x32xf32> -> vector<2x32xf32>
    %33 = arith.addf %31, %32 : vector<2x32xf32>
    %34 = math.tanh %33 : vector<2x32xf32>
    %c6_28 = arith.constant 6 : index
    %c0_29 = arith.constant 0 : index
    %35 = vector.load %arg8[%c6_28, %c0_29] : memref<16x32xf32, #tpu.memory_space<vmem>>, vector<2x32xf32>
    tpu.vector_store %arg8[%c6_28, %c0_29], %34 {strides = array<i32>} : memref<16x32xf32, #tpu.memory_space<vmem>>, vector<2x32xf32>,
    %c8 = arith.constant 8 : index
    %c0_30 = arith.constant 0 : index
    %36 = vector.load %arg7[%c8, %c0_30] : memref<16x32xf32, #tpu.memory_space<vmem>>, vector<2x32xf32>
    %cst_31 = arith.constant dense<0.000000e+00> : vector<2x32xf32>
    %37 = tpu.matmul %34, %14, %cst_31 {dimension_numbers = #tpu.dot_dimension_numbers<[1], [0], [0], [1], [0, 0, 1, 1], [], []>} : vector<2x32xf32>, vector<32x32xf32>, vector<2x32xf32> -> vector<2x32xf32>
    %38 = arith.addf %36, %37 : vector<2x32xf32>
    %39 = math.tanh %38 : vector<2x32xf32>
    %c8_32 = arith.constant 8 : index
    %c0_33 = arith.constant 0 : index
    %40 = vector.load %arg8[%c8_32, %c0_33] : memref<16x32xf32, #tpu.memory_space<vmem>>, vector<2x32xf32>
    tpu.vector_store %arg8[%c8_32, %c0_33], %39 {strides = array<i32>} : memref<16x32xf32, #tpu.memory_space<vmem>>, vector<2x32xf32>,
    %c10 = arith.constant 10 : index
    %c0_34 = arith.constant 0 : index
    %41 = vector.load %arg7[%c10, %c0_34] : memref<16x32xf32, #tpu.memory_space<vmem>>, vector<2x32xf32>
    %cst_35 = arith.constant dense<0.000000e+00> : vector<2x32xf32>
    %42 = tpu.matmul %39, %14, %cst_35 {dimension_numbers = #tpu.dot_dimension_numbers<[1], [0], [0], [1], [0, 0, 1, 1], [], []>} : vector<2x32xf32>, vector<32x32xf32>, vector<2x32xf32> -> vector<2x32xf32>
    %43 = arith.addf %41, %42 : vector<2x32xf32>
    %44 = math.tanh %43 : vector<2x32xf32>
    %c10_36 = arith.constant 10 : index
    %c0_37 = arith.constant 0 : index
    %45 = vector.load %arg8[%c10_36, %c0_37] : memref<16x32xf32, #tpu.memory_space<vmem>>, vector<2x32xf32>
    tpu.vector_store %arg8[%c10_36, %c0_37], %44 {strides = array<i32>} : memref<16x32xf32, #tpu.memory_space<vmem>>, vector<2x32xf32>,
    %c12 = arith.constant 12 : index
    %c0_38 = arith.constant 0 : index
    %46 = vector.load %arg7[%c12, %c0_38] : memref<16x32xf32, #tpu.memory_space<vmem>>, vector<2x32xf32>
    %cst_39 = arith.constant dense<0.000000e+00> : vector<2x32xf32>
    %47 = tpu.matmul %44, %14, %cst_39 {dimension_numbers = #tpu.dot_dimension_numbers<[1], [0], [0], [1], [0, 0, 1, 1], [], []>} : vector<2x32xf32>, vector<32x32xf32>, vector<2x32xf32> -> vector<2x32xf32>
    %48 = arith.addf %46, %47 : vector<2x32xf32>
    %49 = math.tanh %48 : vector<2x32xf32>
    %c12_40 = arith.constant 12 : index
    %c0_41 = arith.constant 0 : index
    %50 = vector.load %arg8[%c12_40, %c0_41] : memref<16x32xf32, #tpu.memory_space<vmem>>, vector<2x32xf32>
    tpu.vector_store %arg8[%c12_40, %c0_41], %49 {strides = array<i32>} : memref<16x32xf32, #tpu.memory_space<vmem>>, vector<2x32xf32>,
    %c14 = arith.constant 14 : index
    %c0_42 = arith.constant 0 : index
    %51 = vector.load %arg7[%c14, %c0_42] : memref<16x32xf32, #tpu.memory_space<vmem>>, vector<2x32xf32>
    %cst_43 = arith.constant dense<0.000000e+00> : vector<2x32xf32>
    %52 = tpu.matmul %49, %14, %cst_43 {dimension_numbers = #tpu.dot_dimension_numbers<[1], [0], [0], [1], [0, 0, 1, 1], [], []>} : vector<2x32xf32>, vector<32x32xf32>, vector<2x32xf32> -> vector<2x32xf32>
    %53 = arith.addf %51, %52 : vector<2x32xf32>
    %54 = math.tanh %53 : vector<2x32xf32>
    %c14_44 = arith.constant 14 : index
    %c0_45 = arith.constant 0 : index
    %55 = vector.load %arg8[%c14_44, %c0_45] : memref<16x32xf32, #tpu.memory_space<vmem>>, vector<2x32xf32>
    tpu.vector_store %arg8[%c14_44, %c0_45], %54 {strides = array<i32>} : memref<16x32xf32, #tpu.memory_space<vmem>>, vector<2x32xf32>,
    %c0_46 = arith.constant 0 : index
    %c0_47 = arith.constant 0 : index
    %56 = vector.load %arg8[%c0_46, %c0_47] : memref<16x32xf32, #tpu.memory_space<vmem>>, vector<16x32xf32>
    %c1 = arith.constant 1 : index
    %c0_48 = arith.constant 0 : index
    %c0_49 = arith.constant 0 : index
    %57 = vector.load %arg1[%c1, %c0_48, %c0_49] : memref<2x32x32xf32, #tpu.memory_space<vmem>>, vector<1x32x32xf32>
    %58 = vector.shape_cast %57 : vector<1x32x32xf32> to vector<32x32xf32>
    %c1_50 = arith.constant 1 : index
    %c0_51 = arith.constant 0 : index
    %c0_52 = arith.constant 0 : index
    %59 = vector.load %arg3[%c1_50, %c0_51, %c0_52] : memref<2x2x32xf32, #tpu.memory_space<vmem>>, vector<1x2x32xf32>
    %60 = vector.shape_cast %59 : vector<1x2x32xf32> to vector<2x32xf32>
    %61 = vector.extract_strided_slice %60 {offsets = [0, 0], sizes = [1, 32], strides = [1, 1]} : vector<2x32xf32> to vector<1x32xf32>
    %62 = vector.extract_strided_slice %60 {offsets = [1, 0], sizes = [1, 32], strides = [1, 1]} : vector<2x32xf32> to vector<1x32xf32>
    %63 = arith.addf %61, %62 : vector<1x32xf32>
    %cst_53 = arith.constant dense<0.000000e+00> : vector<16x32xf32>
    %64 = tpu.matmul %56, %58, %cst_53 {dimension_numbers = #tpu.dot_dimension_numbers<[1], [0], [0], [1], [0, 0, 1, 1], [], []>} : vector<16x32xf32>, vector<32x32xf32>, vector<16x32xf32> -> vector<16x32xf32>
    %65 = vector.broadcast %63 : vector<1x32xf32> to vector<16x32xf32>
    %66 = arith.addf %64, %65 : vector<16x32xf32>
    %c0_54 = arith.constant 0 : index
    %c0_55 = arith.constant 0 : index
    %67 = vector.load %arg7[%c0_54, %c0_55] : memref<16x32xf32, #tpu.memory_space<vmem>>, vector<16x32xf32>
    tpu.vector_store %arg7[%c0_54, %c0_55], %66 {strides = array<i32>} : memref<16x32xf32, #tpu.memory_space<vmem>>, vector<16x32xf32>,
    %c1_56 = arith.constant 1 : index
    %c0_57 = arith.constant 0 : index
    %c0_58 = arith.constant 0 : index
    %68 = vector.load %arg2[%c1_56, %c0_57, %c0_58] : memref<2x32x32xf32, #tpu.memory_space<vmem>>, vector<1x32x32xf32>
    %69 = vector.shape_cast %68 : vector<1x32x32xf32> to vector<32x32xf32>
    %cst_59 = arith.constant 0.000000e+00 : f32
    %70 = vector.broadcast %cst_59 : f32 to vector<2x32xf32>
    %c0_60 = arith.constant 0 : index
    %c0_61 = arith.constant 0 : index
    %71 = vector.load %arg7[%c0_60, %c0_61] : memref<16x32xf32, #tpu.memory_space<vmem>>, vector<2x32xf32>
    %cst_62 = arith.constant dense<0.000000e+00> : vector<2x32xf32>
    %72 = tpu.matmul %70, %69, %cst_62 {dimension_numbers = #tpu.dot_dimension_numbers<[1], [0], [0], [1], [0, 0, 1, 1], [], []>} : vector<2x32xf32>, vector<32x32xf32>, vector<2x32xf32> -> vector<2x32xf32>
    %73 = arith.addf %71, %72 : vector<2x32xf32>
    %74 = math.tanh %73 : vector<2x32xf32>
    %c2_63 = arith.constant 2 : index
    %c0_64 = arith.constant 0 : index
    %75 = vector.load %arg7[%c2_63, %c0_64] : memref<16x32xf32, #tpu.memory_space<vmem>>, vector<2x32xf32>
    %cst_65 = arith.constant dense<0.000000e+00> : vector<2x32xf32>
    %76 = tpu.matmul %74, %69, %cst_65 {dimension_numbers = #tpu.dot_dimension_numbers<[1], [0], [0], [1], [0, 0, 1, 1], [], []>} : vector<2x32xf32>, vector<32x32xf32>, vector<2x32xf32> -> vector<2x32xf32>
    %77 = arith.addf %75, %76 : vector<2x32xf32>
    %78 = math.tanh %77 : vector<2x32xf32>
    %c4_66 = arith.constant 4 : index
    %c0_67 = arith.constant 0 : index
    %79 = vector.load %arg7[%c4_66, %c0_67] : memref<16x32xf32, #tpu.memory_space<vmem>>, vector<2x32xf32>
    %cst_68 = arith.constant dense<0.000000e+00> : vector<2x32xf32>
    %80 = tpu.matmul %78, %69, %cst_68 {dimension_numbers = #tpu.dot_dimension_numbers<[1], [0], [0], [1], [0, 0, 1, 1], [], []>} : vector<2x32xf32>, vector<32x32xf32>, vector<2x32xf32> -> vector<2x32xf32>
    %81 = arith.addf %79, %80 : vector<2x32xf32>
    %82 = math.tanh %81 : vector<2x32xf32>
    %c6_69 = arith.constant 6 : index
    %c0_70 = arith.constant 0 : index
    %83 = vector.load %arg7[%c6_69, %c0_70] : memref<16x32xf32, #tpu.memory_space<vmem>>, vector<2x32xf32>
    %cst_71 = arith.constant dense<0.000000e+00> : vector<2x32xf32>
    %84 = tpu.matmul %82, %69, %cst_71 {dimension_numbers = #tpu.dot_dimension_numbers<[1], [0], [0], [1], [0, 0, 1, 1], [], []>} : vector<2x32xf32>, vector<32x32xf32>, vector<2x32xf32> -> vector<2x32xf32>
    %85 = arith.addf %83, %84 : vector<2x32xf32>
    %86 = math.tanh %85 : vector<2x32xf32>
    %c8_72 = arith.constant 8 : index
    %c0_73 = arith.constant 0 : index
    %87 = vector.load %arg7[%c8_72, %c0_73] : memref<16x32xf32, #tpu.memory_space<vmem>>, vector<2x32xf32>
    %cst_74 = arith.constant dense<0.000000e+00> : vector<2x32xf32>
    %88 = tpu.matmul %86, %69, %cst_74 {dimension_numbers = #tpu.dot_dimension_numbers<[1], [0], [0], [1], [0, 0, 1, 1], [], []>} : vector<2x32xf32>, vector<32x32xf32>, vector<2x32xf32> -> vector<2x32xf32>
    %89 = arith.addf %87, %88 : vector<2x32xf32>
    %90 = math.tanh %89 : vector<2x32xf32>
    %c10_75 = arith.constant 10 : index
    %c0_76 = arith.constant 0 : index
    %91 = vector.load %arg7[%c10_75, %c0_76] : memref<16x32xf32, #tpu.memory_space<vmem>>, vector<2x32xf32>
    %cst_77 = arith.constant dense<0.000000e+00> : vector<2x32xf32>
    %92 = tpu.matmul %90, %69, %cst_77 {dimension_numbers = #tpu.dot_dimension_numbers<[1], [0], [0], [1], [0, 0, 1, 1], [], []>} : vector<2x32xf32>, vector<32x32xf32>, vector<2x32xf32> -> vector<2x32xf32>
    %93 = arith.addf %91, %92 : vector<2x32xf32>
    %94 = math.tanh %93 : vector<2x32xf32>
    %c12_78 = arith.constant 12 : index
    %c0_79 = arith.constant 0 : index
    %95 = vector.load %arg7[%c12_78, %c0_79] : memref<16x32xf32, #tpu.memory_space<vmem>>, vector<2x32xf32>
    %cst_80 = arith.constant dense<0.000000e+00> : vector<2x32xf32>
    %96 = tpu.matmul %94, %69, %cst_80 {dimension_numbers = #tpu.dot_dimension_numbers<[1], [0], [0], [1], [0, 0, 1, 1], [], []>} : vector<2x32xf32>, vector<32x32xf32>, vector<2x32xf32> -> vector<2x32xf32>
    %97 = arith.addf %95, %96 : vector<2x32xf32>
    %98 = math.tanh %97 : vector<2x32xf32>
    %c14_81 = arith.constant 14 : index
    %c0_82 = arith.constant 0 : index
    %99 = vector.load %arg7[%c14_81, %c0_82] : memref<16x32xf32, #tpu.memory_space<vmem>>, vector<2x32xf32>
    %cst_83 = arith.constant dense<0.000000e+00> : vector<2x32xf32>
    %100 = tpu.matmul %98, %69, %cst_83 {dimension_numbers = #tpu.dot_dimension_numbers<[1], [0], [0], [1], [0, 0, 1, 1], [], []>} : vector<2x32xf32>, vector<32x32xf32>, vector<2x32xf32> -> vector<2x32xf32>
    %101 = arith.addf %99, %100 : vector<2x32xf32>
    %102 = math.tanh %101 : vector<2x32xf32>
    %c0_84 = arith.constant 0 : index
    %c0_85 = arith.constant 0 : index
    %103 = vector.load %arg4[%c0_84, %c0_85] : memref<32x4xf32, #tpu.memory_space<vmem>>, vector<32x4xf32>
    %cst_86 = arith.constant dense<0.000000e+00> : vector<2x4xf32>
    %104 = tpu.matmul %102, %103, %cst_86 {dimension_numbers = #tpu.dot_dimension_numbers<[1], [0], [0], [1], [0, 0, 1, 1], [], []>} : vector<2x32xf32>, vector<32x4xf32>, vector<2x4xf32> -> vector<2x4xf32>
    %c0_87 = arith.constant 0 : index
    %c0_88 = arith.constant 0 : index
    %105 = vector.load %arg5[%c0_87, %c0_88] : memref<1x4xf32, #tpu.memory_space<vmem>>, vector<1x4xf32>
    %106 = vector.broadcast %105 : vector<1x4xf32> to vector<2x4xf32>
    %107 = arith.addf %104, %106 : vector<2x4xf32>
    %c0_89 = arith.constant 0 : index
    %c0_90 = arith.constant 0 : index
    %108 = vector.load %arg6[%c0_89, %c0_90] : memref<2x4xf32, #tpu.memory_space<vmem>>, vector<2x4xf32>
    tpu.vector_store %arg6[%c0_89, %c0_90], %107 {strides = array<i32>} : memref<2x4xf32, #tpu.memory_space<vmem>>, vector<2x4xf32>,
    return
  }
}

</mosaic_0001>

<llo_original>
// kernel: tpu_custom_call.1
$region0: #{tpu_custom_call.1}
  #allocation0 [shape = 'u32[]', space=smem, size = 0x4, offset = 0x4, fixed_abs, tag = 'smem constant byte address 0x4 - core index']
  #allocation1 [shape = 'u32[144,128]{1,0:T(1,128)}', space=vmem, size = 0x12000, scoped, tag = 'internal scratch']
  #allocation2 [shape = 'f32[16,32]{1,0:T(8,128)}', space=vmem, size = 0x2000, scoped, tag = 'scratch operand']
  #allocation3 [shape = 'f32[16,32]{1,0:T(8,128)}', space=vmem, size = 0x2000, scoped, tag = 'scratch operand']
  %s0 = inlined_call_operand.vmem [shape: f32[16,16], index: 0, kind: input, shape index: {}]
  %s1 = inlined_call_operand.hbm [shape: f32[2,32,32], index: 1, kind: input, shape index: {}]
  %s2 = inlined_call_operand.hbm [shape: f32[2,32,32], index: 2, kind: input, shape index: {}]
  %s3 = inlined_call_operand.vmem [shape: f32[2,2,32], index: 3, kind: input, shape index: {}]
  %s4 = inlined_call_operand.vmem [shape: f32[32,4], index: 4, kind: input, shape index: {}]
  %s5 = inlined_call_operand.vmem [shape: f32[1,4], index: 5, kind: input, shape index: {}]
  %s6 = inlined_call_operand.hbm [shape: f32[2,4], index: 6, kind: output, shape index: {}]
  %s7 = sld [smem:[#allocation0]]
  $region42: #{tpu_custom_call.1} parent=0
    _
  %s9 = ssub.s32 1, %s7
  %s10 = scalar_select 0, %s9, %s7
  $region1: #{tpu_custom_call.1} parent=0
    #allocation4 [shape = 'u8[32768]{0}', space=vmem, size = 0x8000, scoped, tag = 'input window, operand 1, single buffered']
    #allocation5 [shape = 's32[1]{0}', space=sflag, size = 0x4, scoped, tag = 'scoped memory for tpu_custom_call.1']
    #allocation6 [shape = 's32[1]{0}', space=sflag, size = 0x4, scoped, tag = 'scoped memory for tpu_custom_call.1']
    #allocation7 [shape = 'u8[32768]{0}', space=vmem, size = 0x8000, scoped, tag = 'input window, operand 2, single buffered']
    #allocation8 [shape = 's32[1]{0}', space=sflag, size = 0x4, scoped, tag = 'scoped memory for tpu_custom_call.1']
    #allocation9 [shape = 'u8[1024]{0}', space=vmem, size = 0x400, scoped, tag = 'output window, operand 0, single buffered']
    %11 = vsyncpa [#allocation5], 0
    %12 = vsyncpa [#allocation8], 0
    %13 = vsyncpa [#allocation6], 0
    // Predicated region
    $region2: #{tpu_custom_call.1} parent=1 // pred_check
      _
    $region3: #{tpu_custom_call.1} parent=1 // pred_check_branch
      %15 = sbr.rel (0) target = $region5
    $region4: #{tpu_custom_call.1} parent=1 // pred_region
      _
    $region5: #{tpu_custom_call.1} parent=1 // pred_fallthru
      _
    // Predicated region
    $region6: #{tpu_custom_call.1} parent=1 // pred_check
      _
    $region7: #{tpu_custom_call.1} parent=1 // pred_check_branch
      %17 = sbr.rel (0) target = $region9
    $region8: #{tpu_custom_call.1} parent=1 // pred_region
      %s19 = ssub.s32 1024, 1024
      %20 = vsyncadd [#allocation5], %s19
      %s21 = sshll.u32 [#allocation4], 4
      %s22 = int_to_ptr.vmem [resolvable:$true] %s21
      %27 = dma.hbm_to_vmem [thread:$0]  %s1, 1024, %s22, [#allocation5], 128, 128, 8
    $region9: #{tpu_custom_call.1} parent=1 // pred_fallthru
      _
    // Predicated region
    $region10: #{tpu_custom_call.1} parent=1 // pred_check
      _
    $region11: #{tpu_custom_call.1} parent=1 // pred_check_branch
      %29 = sbr.rel (0) target = $region13
    $region12: #{tpu_custom_call.1} parent=1 // pred_region
      %s31 = ssub.s32 1024, 1024
      %32 = vsyncadd [#allocation8], %s31
      %s33 = sshll.u32 [#allocation7], 4
      %s34 = int_to_ptr.vmem [resolvable:$true] %s33
      %39 = dma.hbm_to_vmem [thread:$0]  %s2, 1024, %s34, [#allocation8], 128, 128, 8
    $region13: #{tpu_custom_call.1} parent=1 // pred_fallthru
      _
    // Predicated region
    $region14: #{tpu_custom_call.1} parent=1 // pred_check
      _
    $region15: #{tpu_custom_call.1} parent=1 // pred_check_branch
      %41 = sbr.rel (0) target = $region17
    $region16: #{tpu_custom_call.1} parent=1 // pred_region
      _
    $region17: #{tpu_custom_call.1} parent=1 // pred_fallthru
      _
    // Predicated region
    $region18: #{tpu_custom_call.1} parent=1 // pred_check
      _
    $region19: #{tpu_custom_call.1} parent=1 // pred_check_branch
      %43 = sbr.rel (0) target = $region21
    $region20: #{tpu_custom_call.1} parent=1 // pred_region
      _
    $region21: #{tpu_custom_call.1} parent=1 // pred_fallthru
      _
    // Predicated region
    $region22: #{tpu_custom_call.1} parent=1 // pred_check
      _
    $region23: #{tpu_custom_call.1} parent=1 // pred_check_branch
      %45 = sbr.rel (0) target = $region25
    $region24: #{tpu_custom_call.1} parent=1 // pred_region
      _
    $region25: #{tpu_custom_call.1} parent=1 // pred_fallthru
      _
    // Predicated region
    $region26: #{tpu_custom_call.1} parent=1 // pred_check
      _
    $region27: #{tpu_custom_call.1} parent=1 // pred_check_branch
      %47 = sbr.rel (0) target = $region29
    $region28: #{tpu_custom_call.1} parent=1 // pred_region
      %48 = dma.done [#allocation5], 1024
    $region29: #{tpu_custom_call.1} parent=1 // pred_fallthru
      _
    // Predicated region
    $region30: #{tpu_custom_call.1} parent=1 // pred_check
      _
    $region31: #{tpu_custom_call.1} parent=1 // pred_check_branch
      %50 = sbr.rel (0) target = $region33
    $region32: #{tpu_custom_call.1} parent=1 // pred_region
      %51 = dma.done [#allocation8], 1024
    $region33: #{tpu_custom_call.1} parent=1 // pred_fallthru
      _
    %v52 = vld [vmem:[%s0] sm:$0xff]
    %v53 = vld [vmem:[%s0 + $0x8] sm:$0xff]
    %v54 = vld [vmem:[#allocation4] sm:$0xff]
    %v55 = vld [vmem:[#allocation4 + $0x8] sm:$0xff]
    %v56 = vld [vmem:[%s3] sm:$0x3]
    %v58 = vrot.slane %v56, 1
    %v60 = vadd.f32 %v56, %v58
    %v61 = vlaneseq
    %v62 = vshrl.u32 %v61, 7
    %v63 = vsub.s32 0, %v62
    %v64 = vrot.slane %v60, %v63
    %vm65 = vcmask 130048
    %v67 = vsel %vm65, %v52, 0
    %v70 = vsel %vm65, %v53, 0
    %72 = vmatprep.subr.mxu0 0.0
    %73 = vmatpush1.msra.mxu0 0.0
    %74 = vmatprep.subr.mxu0 0.0
    %75 = vmatpush1.msra.mxu0 0.0
    %76 = vmatprep.subr.mxu0 0.0
    %77 = vmatpush1.msra.mxu0 0.0
    %78 = vmatprep.subr.mxu0 0.0
    %79 = vmatpush1.msra.mxu0 0.0
    %80 = vmatprep.subr.mxu0 0.0
    %81 = vmatpush1.msra.mxu0 0.0
    %82 = vmatprep.subr.mxu0 0.0
    %83 = vmatpush1.msra.mxu0 0.0
    %84 = vmatprep.subr.mxu0 0.0
    %85 = vmatpush1.msra.mxu0 0.0
    %86 = vmatprep.subr.mxu0 0.0
    %87 = vmatpush1.msra.mxu0 0.0
    %88 = vmatprep.subr.mxu0 0.0
    %89 = vmatpush1.msra.mxu0 0.0
    %90 = vmatprep.subr.mxu0 0.0
    %91 = vmatpush1.msra.mxu0 0.0
    %92 = vmatprep.subr.mxu0 0.0
    %93 = vmatpush1.msra.mxu0 0.0
    %94 = vmatprep.subr.mxu0 0.0
    %95 = vmatpush1.msra.mxu0 0.0
    %96 = vmatprep.subr.mxu0 0.0
    %97 = vmatpush1.msra.mxu0 0.0
    %98 = vmatprep.subr.mxu0 0.0
    %99 = vmatpush1.msra.mxu0 0.0
    %100 = vmatprep.subr.mxu0 0.0
    %101 = vmatpush1.msra.mxu0 %v55
    %102 = vmatprep.subr.mxu0 0.0
    %103 = vmatpush1.msra.mxu0 %v54
    %104 = vmatprep.subr.mxu0 0.0
    %105 = vmatpush2.msra.mxu0 0.0
    %106 = vmatprep.subr.mxu0 0.0
    %107 = vmatpush2.msra.mxu0 0.0
    %108 = vmatprep.subr.mxu0 0.0
    %109 = vmatpush2.msra.mxu0 0.0
    %110 = vmatprep.subr.mxu0 0.0
    %111 = vmatpush2.msra.mxu0 0.0
    %112 = vmatprep.subr.mxu0 0.0
    %113 = vmatpush2.msra.mxu0 0.0
    %114 = vmatprep.subr.mxu0 0.0
    %115 = vmatpush2.msra.mxu0 0.0
    %116 = vmatprep.subr.mxu0 0.0
    %117 = vmatpush2.msra.mxu0 0.0
    %118 = vmatprep.subr.mxu0 0.0
    %119 = vmatpush2.msra.mxu0 0.0
    %120 = vmatprep.subr.mxu0 0.0
    %121 = vmatpush2.msra.mxu0 0.0
    %122 = vmatprep.subr.mxu0 0.0
    %123 = vmatpush2.msra.mxu0 0.0
    %124 = vmatprep.subr.mxu0 0.0
    %125 = vmatpush2.msra.mxu0 0.0
    %126 = vmatprep.subr.mxu0 0.0
    %127 = vmatpush2.msra.mxu0 0.0
    %128 = vmatprep.subr.mxu0 0.0
    %129 = vmatpush2.msra.mxu0 0.0
    %130 = vmatprep.subr.mxu0 0.0
    %131 = vmatpush2.msra.mxu0 0.0
    %132 = vmatprep.subr.mxu0 0.0
    %133 = vmatpush2.msra.mxu0 0.0
    %134 = vmatprep.subr.mxu0 0.0
    %135 = vmatpush2.msra.mxu0 0.0
    %136 = vmatprep.mubr.f32.mxu0 0.0
    %137 = vmatmul.mubr.f32.gmra.mxu0 %v67
    %v138 = vpop.f32.mrf.mxu0
    %v139 = vadd.f32 %v64, %v138
    %v140 = vpop.f32.mrf.mxu0
    %141 = vmatprep.mubr.f32.mxu0 0.0
    %142 = vmatmul.mubr.f32.gmra.mxu0 %v70
    %v143 = vpop.f32.mrf.mxu0
    %v144 = vadd.f32 %v64, %v143
    %v145 = vpop.f32.mrf.mxu0
    %146 = vdwg.mxu0
    %vm147 = vcmask 261120
    %148 = vst.msk [vmem:[#allocation2] sm:$0xff] %vm147, %v139
    %149 = vst.msk [vmem:[#allocation2 + $0x8] sm:$0xff] %vm147, %v144
    %v150 = vld [vmem:[#allocation7] sm:$0xff]
    %v151 = vld [vmem:[#allocation7 + $0x8] sm:$0xff]
    %v152 = vld [vmem:[#allocation7 + $0x10] sm:$0xff]
    %v153 = vld [vmem:[#allocation7 + $0x18] sm:$0xff]
    %v154 = vld [vmem:[#allocation2] sm:$0x3]
    %v156 = vsel %vm147, 0.0, 0
    %158 = vmatprep.subr.mxu0 0.0
    %159 = vmatpush1.msra.mxu0 0.0
    %160 = vmatprep.subr.mxu0 0.0
    %161 = vmatpush1.msra.mxu0 0.0
    %162 = vmatprep.subr.mxu0 0.0
    %163 = vmatpush1.msra.mxu0 0.0
    %164 = vmatprep.subr.mxu0 0.0
    %165 = vmatpush1.msra.mxu0 0.0
    %166 = vmatprep.subr.mxu0 0.0
    %167 = vmatpush1.msra.mxu0 0.0
    %168 = vmatprep.subr.mxu0 0.0
    %169 = vmatpush1.msra.mxu0 0.0
    %170 = vmatprep.subr.mxu0 0.0
    %171 = vmatpush1.msra.mxu0 0.0
    %172 = vmatprep.subr.mxu0 0.0
    %173 = vmatpush1.msra.mxu0 0.0
    %174 = vmatprep.subr.mxu0 0.0
    %175 = vmatpush1.msra.mxu0 0.0
    %176 = vmatprep.subr.mxu0 0.0
    %177 = vmatpush1.msra.mxu0 0.0
    %178 = vmatprep.subr.mxu0 0.0
    %179 = vmatpush1.msra.mxu0 0.0
    %180 = vmatprep.subr.mxu0 0.0
    %181 = vmatpush1.msra.mxu0 0.0
    %182 = vmatprep.subr.mxu0 0.0
    %183 = vmatpush1.msra.mxu0 %v153
    %184 = vmatprep.subr.mxu0 0.0
    %185 = vmatpush1.msra.mxu0 %v152
    %186 = vmatprep.subr.mxu0 0.0
    %187 = vmatpush1.msra.mxu0 %v151
    %188 = vmatprep.subr.mxu0 0.0
    %189 = vmatpush1.msra.mxu0 %v150
    %190 = vmatprep.subr.mxu0 0.0
    %191 = vmatpush2.msra.mxu0 0.0
    %192 = vmatprep.subr.mxu0 0.0
    %193 = vmatpush2.msra.mxu0 0.0
    %194 = vmatprep.subr.mxu0 0.0
    %195 = vmatpush2.msra.mxu0 0.0
    %196 = vmatprep.subr.mxu0 0.0
    %197 = vmatpush2.msra.mxu0 0.0
    %198 = vmatprep.subr.mxu0 0.0
    %199 = vmatpush2.msra.mxu0 0.0
    %200 = vmatprep.subr.mxu0 0.0
    %201 = vmatpush2.msra.mxu0 0.0
    %202 = vmatprep.subr.mxu0 0.0
    %203 = vmatpush2.msra.mxu0 0.0
    %204 = vmatprep.subr.mxu0 0.0
    %205 = vmatpush2.msra.mxu0 0.0
    %206 = vmatprep.subr.mxu0 0.0
    %207 = vmatpush2.msra.mxu0 0.0
    %208 = vmatprep.subr.mxu0 0.0
    %209 = vmatpush2.msra.mxu0 0.0
    %210 = vmatprep.subr.mxu0 0.0
    %211 = vmatpush2.msra.mxu0 0.0
    %212 = vmatprep.subr.mxu0 0.0
    %213 = vmatpush2.msra.mxu0 0.0
    %214 = vmatprep.subr.mxu0 0.0
    %215 = vmatpush2.msra.mxu0 0.0
    %216 = vmatprep.subr.mxu0 0.0
    %217 = vmatpush2.msra.mxu0 0.0
    %218 = vmatprep.subr.mxu0 0.0
    %219 = vmatpush2.msra.mxu0 0.0
    %220 = vmatprep.subr.mxu0 0.0
    %221 = vmatpush2.msra.mxu0 0.0
    %222 = vmatprep.mubr.f32.mxu0 0.0
    %223 = vmatmul.mubr.f32.gmra.mxu0 %v156
    %v224 = vpop.f32.mrf.mxu0
    %v225 = vadd.f32 0.0, %v224
    %v226 = vpop.f32.mrf.mxu0
    %227 = vdwg.mxu0
    %v228 = vadd.f32 %v154, %v225
    %v229 = vtanh.pop %v228
    %vm230 = vcmask 254976
    %231 = vst.msk [vmem:[#allocation3] sm:$0x3] %vm230, %v229
    %v232 = vld [vmem:[#allocation2 + $0x2] sm:$0x3]
    %v234 = vsel %vm147, %v229, 0
    %236 = vmatprep.subr.mxu0 0.0
    %237 = vmatpush1.msra.mxu0 0.0
    %238 = vmatprep.subr.mxu0 0.0
    %239 = vmatpush1.msra.mxu0 0.0
    %240 = vmatprep.subr.mxu0 0.0
    %241 = vmatpush1.msra.mxu0 0.0
    %242 = vmatprep.subr.mxu0 0.0
    %243 = vmatpush1.msra.mxu0 0.0
    %244 = vmatprep.subr.mxu0 0.0
    %245 = vmatpush1.msra.mxu0 0.0
    %246 = vmatprep.subr.mxu0 0.0
    %247 = vmatpush1.msra.mxu0 0.0
    %248 = vmatprep.subr.mxu0 0.0
    %249 = vmatpush1.msra.mxu0 0.0
    %250 = vmatprep.subr.mxu0 0.0
    %251 = vmatpush1.msra.mxu0 0.0
    %252 = vmatprep.subr.mxu0 0.0
    %253 = vmatpush1.msra.mxu0 0.0
    %254 = vmatprep.subr.mxu0 0.0
    %255 = vmatpush1.msra.mxu0 0.0
    %256 = vmatprep.subr.mxu0 0.0
    %257 = vmatpush1.msra.mxu0 0.0
    %258 = vmatprep.subr.mxu0 0.0
    %259 = vmatpush1.msra.mxu0 0.0
    %260 = vmatprep.subr.mxu0 0.0
    %261 = vmatpush1.msra.mxu0 %v153
    %262 = vmatprep.subr.mxu0 0.0
    %263 = vmatpush1.msra.mxu0 %v152
    %264 = vmatprep.subr.mxu0 0.0
    %265 = vmatpush1.msra.mxu0 %v151
    %266 = vmatprep.subr.mxu0 0.0
    %267 = vmatpush1.msra.mxu0 %v150
    %268 = vmatprep.subr.mxu0 0.0
    %269 = vmatpush2.msra.mxu0 0.0
    %270 = vmatprep.subr.mxu0 0.0
    %271 = vmatpush2.msra.mxu0 0.0
    %272 = vmatprep.subr.mxu0 0.0
    %273 = vmatpush2.msra.mxu0 0.0
    %274 = vmatprep.subr.mxu0 0.0
    %275 = vmatpush2.msra.mxu0 0.0
    %276 = vmatprep.subr.mxu0 0.0
    %277 = vmatpush2.msra.mxu0 0.0
    %278 = vmatprep.subr.mxu0 0.0
    %279 = vmatpush2.msra.mxu0 0.0
    %280 = vmatprep.subr.mxu0 0.0
    %281 = vmatpush2.msra.mxu0 0.0
    %282 = vmatprep.subr.mxu0 0.0
    %283 = vmatpush2.msra.mxu0 0.0
    %284 = vmatprep.subr.mxu0 0.0
    %285 = vmatpush2.msra.mxu0 0.0
    %286 = vmatprep.subr.mxu0 0.0
    %287 = vmatpush2.msra.mxu0 0.0
    %288 = vmatprep.subr.mxu0 0.0
    %289 = vmatpush2.msra.mxu0 0.0
    %290 = vmatprep.subr.mxu0 0.0
    %291 = vmatpush2.msra.mxu0 0.0
    %292 = vmatprep.subr.mxu0 0.0
    %293 = vmatpush2.msra.mxu0 0.0
    %294 = vmatprep.subr.mxu0 0.0
    %295 = vmatpush2.msra.mxu0 0.0
    %296 = vmatprep.subr.mxu0 0.0
    %297 = vmatpush2.msra.mxu0 0.0
    %298 = vmatprep.subr.mxu0 0.0
    %299 = vmatpush2.msra.mxu0 0.0
    %300 = vmatprep.mubr.f32.mxu0 0.0
    %301 = vmatmul.mubr.f32.gmra.mxu0 %v234
    %v302 = vpop.f32.mrf.mxu0
    %v303 = vadd.f32 0.0, %v302
    %v304 = vpop.f32.mrf.mxu0
    %305 = vdwg.mxu0
    %v306 = vadd.f32 %v232, %v303
    %v307 = vtanh.pop %v306
    %308 = vst.msk [vmem:[#allocation3 + $0x2] sm:$0x3] %vm230, %v307
    %v309 = vld [vmem:[#allocation2 + $0x4] sm:$0x3]
    %v311 = vsel %vm147, %v307, 0
    %313 = vmatprep.subr.mxu0 0.0
    %314 = vmatpush1.msra.mxu0 0.0
    %315 = vmatprep.subr.mxu0 0.0
    %316 = vmatpush1.msra.mxu0 0.0
    %317 = vmatprep.subr.mxu0 0.0
    %318 = vmatpush1.msra.mxu0 0.0
    %319 = vmatprep.subr.mxu0 0.0
    %320 = vmatpush1.msra.mxu0 0.0
    %321 = vmatprep.subr.mxu0 0.0
    %322 = vmatpush1.msra.mxu0 0.0
    %323 = vmatprep.subr.mxu0 0.0
    %324 = vmatpush1.msra.mxu0 0.0
    %325 = vmatprep.subr.mxu0 0.0
    %326 = vmatpush1.msra.mxu0 0.0
    %327 = vmatprep.subr.mxu0 0.0
    %328 = vmatpush1.msra.mxu0 0.0
    %329 = vmatprep.subr.mxu0 0.0
    %330 = vmatpush1.msra.mxu0 0.0
    %331 = vmatprep.subr.mxu0 0.0
    %332 = vmatpush1.msra.mxu0 0.0
    %333 = vmatprep.subr.mxu0 0.0
    %334 = vmatpush1.msra.mxu0 0.0
    %335 = vmatprep.subr.mxu0 0.0
    %336 = vmatpush1.msra.mxu0 0.0
    %337 = vmatprep.subr.mxu0 0.0
    %338 = vmatpush1.msra.mxu0 %v153
    %339 = vmatprep.subr.mxu0 0.0
    %340 = vmatpush1.msra.mxu0 %v152
    %341 = vmatprep.subr.mxu0 0.0
    %342 = vmatpush1.msra.mxu0 %v151
    %343 = vmatprep.subr.mxu0 0.0
    %344 = vmatpush1.msra.mxu0 %v150
    %345 = vmatprep.subr.mxu0 0.0
    %346 = vmatpush2.msra.mxu0 0.0
    %347 = vmatprep.subr.mxu0 0.0
    %348 = vmatpush2.msra.mxu0 0.0
    %349 = vmatprep.subr.mxu0 0.0
    %350 = vmatpush2.msra.mxu0 0.0
    %351 = vmatprep.subr.mxu0 0.0
    %352 = vmatpush2.msra.mxu0 0.0
    %353 = vmatprep.subr.mxu0 0.0
    %354 = vmatpush2.msra.mxu0 0.0
    %355 = vmatprep.subr.mxu0 0.0
    %356 = vmatpush2.msra.mxu0 0.0
    %357 = vmatprep.subr.mxu0 0.0
    %358 = vmatpush2.msra.mxu0 0.0
    %359 = vmatprep.subr.mxu0 0.0
    %360 = vmatpush2.msra.mxu0 0.0
    %361 = vmatprep.subr.mxu0 0.0
    %362 = vmatpush2.msra.mxu0 0.0
    %363 = vmatprep.subr.mxu0 0.0
    %364 = vmatpush2.msra.mxu0 0.0
    %365 = vmatprep.subr.mxu0 0.0
    %366 = vmatpush2.msra.mxu0 0.0
    %367 = vmatprep.subr.mxu0 0.0
    %368 = vmatpush2.msra.mxu0 0.0
    %369 = vmatprep.subr.mxu0 0.0
    %370 = vmatpush2.msra.mxu0 0.0
    %371 = vmatprep.subr.mxu0 0.0
    %372 = vmatpush2.msra.mxu0 0.0
    %373 = vmatprep.subr.mxu0 0.0
    %374 = vmatpush2.msra.mxu0 0.0
    %375 = vmatprep.subr.mxu0 0.0
    %376 = vmatpush2.msra.mxu0 0.0
    %377 = vmatprep.mubr.f32.mxu0 0.0
    %378 = vmatmul.mubr.f32.gmra.mxu0 %v311
    %v379 = vpop.f32.mrf.mxu0
    %v380 = vadd.f32 0.0, %v379
    %v381 = vpop.f32.mrf.mxu0
    %382 = vdwg.mxu0
    %v383 = vadd.f32 %v309, %v380
    %v384 = vtanh.pop %v383
    %385 = vst.msk [vmem:[#allocation3 + $0x4] sm:$0x3] %vm230, %v384
    %v386 = vld [vmem:[#allocation2 + $0x6] sm:$0x3]
    %v388 = vsel %vm147, %v384, 0
    %390 = vmatprep.subr.mxu0 0.0
    %391 = vmatpush1.msra.mxu0 0.0
    %392 = vmatprep.subr.mxu0 0.0
    %393 = vmatpush1.msra.mxu0 0.0
    %394 = vmatprep.subr.mxu0 0.0
    %395 = vmatpush1.msra.mxu0 0.0
    %396 = vmatprep.subr.mxu0 0.0
    %397 = vmatpush1.msra.mxu0 0.0
    %398 = vmatprep.subr.mxu0 0.0
    %399 = vmatpush1.msra.mxu0 0.0
    %400 = vmatprep.subr.mxu0 0.0
    %401 = vmatpush1.msra.mxu0 0.0
    %402 = vmatprep.subr.mxu0 0.0
    %403 = vmatpush1.msra.mxu0 0.0
    %404 = vmatprep.subr.mxu0 0.0
    %405 = vmatpush1.msra.mxu0 0.0
    %406 = vmatprep.subr.mxu0 0.0
    %407 = vmatpush1.msra.mxu0 0.0
    %408 = vmatprep.subr.mxu0 0.0
    %409 = vmatpush1.msra.mxu0 0.0
    %410 = vmatprep.subr.mxu0 0.0
    %411 = vmatpush1.msra.mxu0 0.0
    %412 = vmatprep.subr.mxu0 0.0
    %413 = vmatpush1.msra.mxu0 0.0
    %414 = vmatprep.subr.mxu0 0.0
    %415 = vmatpush1.msra.mxu0 %v153
    %416 = vmatprep.subr.mxu0 0.0
    %417 = vmatpush1.msra.mxu0 %v152
    %418 = vmatprep.subr.mxu0 0.0
    %419 = vmatpush1.msra.mxu0 %v151
    %420 = vmatprep.subr.mxu0 0.0
    %421 = vmatpush1.msra.mxu0 %v150
    %422 = vmatprep.subr.mxu0 0.0
    %423 = vmatpush2.msra.mxu0 0.0
    %424 = vmatprep.subr.mxu0 0.0
    %425 = vmatpush2.msra.mxu0 0.0
    %426 = vmatprep.subr.mxu0 0.0
    %427 = vmatpush2.msra.mxu0 0.0
    %428 = vmatprep.subr.mxu0 0.0
    %429 = vmatpush2.msra.mxu0 0.0
    %430 = vmatprep.subr.mxu0 0.0
    %431 = vmatpush2.msra.mxu0 0.0
    %432 = vmatprep.subr.mxu0 0.0
    %433 = vmatpush2.msra.mxu0 0.0
    %434 = vmatprep.subr.mxu0 0.0
    %435 = vmatpush2.msra.mxu0 0.0
    %436 = vmatprep.subr.mxu0 0.0
    %437 = vmatpush2.msra.mxu0 0.0
    %438 = vmatprep.subr.mxu0 0.0
    %439 = vmatpush2.msra.mxu0 0.0
    %440 = vmatprep.subr.mxu0 0.0
    %441 = vmatpush2.msra.mxu0 0.0
    %442 = vmatprep.subr.mxu0 0.0
    %443 = vmatpush2.msra.mxu0 0.0
    %444 = vmatprep.subr.mxu0 0.0
    %445 = vmatpush2.msra.mxu0 0.0
    %446 = vmatprep.subr.mxu0 0.0
    %447 = vmatpush2.msra.mxu0 0.0
    %448 = vmatprep.subr.mxu0 0.0
    %449 = vmatpush2.msra.mxu0 0.0
    %450 = vmatprep.subr.mxu0 0.0
    %451 = vmatpush2.msra.mxu0 0.0
    %452 = vmatprep.subr.mxu0 0.0
    %453 = vmatpush2.msra.mxu0 0.0
    %454 = vmatprep.mubr.f32.mxu0 0.0
    %455 = vmatmul.mubr.f32.gmra.mxu0 %v388
    %v456 = vpop.f32.mrf.mxu0
    %v457 = vadd.f32 0.0, %v456
    %v458 = vpop.f32.mrf.mxu0
    %459 = vdwg.mxu0
    %v460 = vadd.f32 %v386, %v457
    %v461 = vtanh.pop %v460
    %462 = vst.msk [vmem:[#allocation3 + $0x6] sm:$0x3] %vm230, %v461
    %v463 = vld [vmem:[#allocation2 + $0x8] sm:$0x3]
    %v465 = vsel %vm147, %v461, 0
    %467 = vmatprep.subr.mxu0 0.0
    %468 = vmatpush1.msra.mxu0 0.0
    %469 = vmatprep.subr.mxu0 0.0
    %470 = vmatpush1.msra.mxu0 0.0
    %471 = vmatprep.subr.mxu0 0.0
    %472 = vmatpush1.msra.mxu0 0.0
    %473 = vmatprep.subr.mxu0 0.0
    %474 = vmatpush1.msra.mxu0 0.0
    %475 = vmatprep.subr.mxu0 0.0
    %476 = vmatpush1.msra.mxu0 0.0
    %477 = vmatprep.subr.mxu0 0.0
    %478 = vmatpush1.msra.mxu0 0.0
    %479 = vmatprep.subr.mxu0 0.0
    %480 = vmatpush1.msra.mxu0 0.0
    %481 = vmatprep.subr.mxu0 0.0
    %482 = vmatpush1.msra.mxu0 0.0
    %483 = vmatprep.subr.mxu0 0.0
    %484 = vmatpush1.msra.mxu0 0.0
    %485 = vmatprep.subr.mxu0 0.0
    %486 = vmatpush1.msra.mxu0 0.0
    %487 = vmatprep.subr.mxu0 0.0
    %488 = vmatpush1.msra.mxu0 0.0
    %489 = vmatprep.subr.mxu0 0.0
    %490 = vmatpush1.msra.mxu0 0.0
    %491 = vmatprep.subr.mxu0 0.0
    %492 = vmatpush1.msra.mxu0 %v153
    %493 = vmatprep.subr.mxu0 0.0
    %494 = vmatpush1.msra.mxu0 %v152
    %495 = vmatprep.subr.mxu0 0.0
    %496 = vmatpush1.msra.mxu0 %v151
    %497 = vmatprep.subr.mxu0 0.0
    %498 = vmatpush1.msra.mxu0 %v150
    %499 = vmatprep.subr.mxu0 0.0
    %500 = vmatpush2.msra.mxu0 0.0
    %501 = vmatprep.subr.mxu0 0.0
    %502 = vmatpush2.msra.mxu0 0.0
    %503 = vmatprep.subr.mxu0 0.0
    %504 = vmatpush2.msra.mxu0 0.0
    %505 = vmatprep.subr.mxu0 0.0
    %506 = vmatpush2.msra.mxu0 0.0
    %507 = vmatprep.subr.mxu0 0.0
    %508 = vmatpush2.msra.mxu0 0.0
    %509 = vmatprep.subr.mxu0 0.0
    %510 = vmatpush2.msra.mxu0 0.0
    %511 = vmatprep.subr.mxu0 0.0
    %512 = vmatpush2.msra.mxu0 0.0
    %513 = vmatprep.subr.mxu0 0.0
    %514 = vmatpush2.msra.mxu0 0.0
    %515 = vmatprep.subr.mxu0 0.0
    %516 = vmatpush2.msra.mxu0 0.0
    %517 = vmatprep.subr.mxu0 0.0
    %518 = vmatpush2.msra.mxu0 0.0
    %519 = vmatprep.subr.mxu0 0.0
    %520 = vmatpush2.msra.mxu0 0.0
    %521 = vmatprep.subr.mxu0 0.0
    %522 = vmatpush2.msra.mxu0 0.0
    %523 = vmatprep.subr.mxu0 0.0
    %524 = vmatpush2.msra.mxu0 0.0
    %525 = vmatprep.subr.mxu0 0.0
    %526 = vmatpush2.msra.mxu0 0.0
    %527 = vmatprep.subr.mxu0 0.0
    %528 = vmatpush2.msra.mxu0 0.0
    %529 = vmatprep.subr.mxu0 0.0
    %530 = vmatpush2.msra.mxu0 0.0
    %531 = vmatprep.mubr.f32.mxu0 0.0
    %532 = vmatmul.mubr.f32.gmra.mxu0 %v465
    %v533 = vpop.f32.mrf.mxu0
    %v534 = vadd.f32 0.0, %v533
    %v535 = vpop.f32.mrf.mxu0
    %536 = vdwg.mxu0
    %v537 = vadd.f32 %v463, %v534
    %v538 = vtanh.pop %v537
    %539 = vst.msk [vmem:[#allocation3 + $0x8] sm:$0x3] %vm230, %v538
    %v540 = vld [vmem:[#allocation2 + $0xa] sm:$0x3]
    %v542 = vsel %vm147, %v538, 0
    %544 = vmatprep.subr.mxu0 0.0
    %545 = vmatpush1.msra.mxu0 0.0
    %546 = vmatprep.subr.mxu0 0.0
    %547 = vmatpush1.msra.mxu0 0.0
    %548 = vmatprep.subr.mxu0 0.0
    %549 = vmatpush1.msra.mxu0 0.0
    %550 = vmatprep.subr.mxu0 0.0
    %551 = vmatpush1.msra.mxu0 0.0
    %552 = vmatprep.subr.mxu0 0.0
    %553 = vmatpush1.msra.mxu0 0.0
    %554 = vmatprep.subr.mxu0 0.0
    %555 = vmatpush1.msra.mxu0 0.0
    %556 = vmatprep.subr.mxu0 0.0
    %557 = vmatpush1.msra.mxu0 0.0
    %558 = vmatprep.subr.mxu0 0.0
    %559 = vmatpush1.msra.mxu0 0.0
    %560 = vmatprep.subr.mxu0 0.0
    %561 = vmatpush1.msra.mxu0 0.0
    %562 = vmatprep.subr.mxu0 0.0
    %563 = vmatpush1.msra.mxu0 0.0
    %564 = vmatprep.subr.mxu0 0.0
    %565 = vmatpush1.msra.mxu0 0.0
    %566 = vmatprep.subr.mxu0 0.0
    %567 = vmatpush1.msra.mxu0 0.0
    %568 = vmatprep.subr.mxu0 0.0
    %569 = vmatpush1.msra.mxu0 %v153
    %570 = vmatprep.subr.mxu0 0.0
    %571 = vmatpush1.msra.mxu0 %v152
    %572 = vmatprep.subr.mxu0 0.0
    %573 = vmatpush1.msra.mxu0 %v151
    %574 = vmatprep.subr.mxu0 0.0
    %575 = vmatpush1.msra.mxu0 %v150
    %576 = vmatprep.subr.mxu0 0.0
    %577 = vmatpush2.msra.mxu0 0.0
    %578 = vmatprep.subr.mxu0 0.0
    %579 = vmatpush2.msra.mxu0 0.0
    %580 = vmatprep.subr.mxu0 0.0
    %581 = vmatpush2.msra.mxu0 0.0
    %582 = vmatprep.subr.mxu0 0.0
    %583 = vmatpush2.msra.mxu0 0.0
    %584 = vmatprep.subr.mxu0 0.0
    %585 = vmatpush2.msra.mxu0 0.0
    %586 = vmatprep.subr.mxu0 0.0
    %587 = vmatpush2.msra.mxu0 0.0
    %588 = vmatprep.subr.mxu0 0.0
    %589 = vmatpush2.msra.mxu0 0.0
    %590 = vmatprep.subr.mxu0 0.0
    %591 = vmatpush2.msra.mxu0 0.0
    %592 = vmatprep.subr.mxu0 0.0
    %593 = vmatpush2.msra.mxu0 0.0
    %594 = vmatprep.subr.mxu0 0.0
    %595 = vmatpush2.msra.mxu0 0.0
    %596 = vmatprep.subr.mxu0 0.0
    %597 = vmatpush2.msra.mxu0 0.0
    %598 = vmatprep.subr.mxu0 0.0
    %599 = vmatpush2.msra.mxu0 0.0
    %600 = vmatprep.subr.mxu0 0.0
    %601 = vmatpush2.msra.mxu0 0.0
    %602 = vmatprep.subr.mxu0 0.0
    %603 = vmatpush2.msra.mxu0 0.0
    %604 = vmatprep.subr.mxu0 0.0
    %605 = vmatpush2.msra.mxu0 0.0
    %606 = vmatprep.subr.mxu0 0.0
    %607 = vmatpush2.msra.mxu0 0.0
    %608 = vmatprep.mubr.f32.mxu0 0.0
    %609 = vmatmul.mubr.f32.gmra.mxu0 %v542
    %v610 = vpop.f32.mrf.mxu0
    %v611 = vadd.f32 0.0, %v610
    %v612 = vpop.f32.mrf.mxu0
    %613 = vdwg.mxu0
    %v614 = vadd.f32 %v540, %v611
    %v615 = vtanh.pop %v614
    %616 = vst.msk [vmem:[#allocation3 + $0xa] sm:$0x3] %vm230, %v615
    %v617 = vld [vmem:[#allocation2 + $0xc] sm:$0x3]
    %v619 = vsel %vm147, %v615, 0
    %621 = vmatprep.subr.mxu0 0.0
    %622 = vmatpush1.msra.mxu0 0.0
    %623 = vmatprep.subr.mxu0 0.0
    %624 = vmatpush1.msra.mxu0 0.0
    %625 = vmatprep.subr.mxu0 0.0
    %626 = vmatpush1.msra.mxu0 0.0
    %627 = vmatprep.subr.mxu0 0.0
    %628 = vmatpush1.msra.mxu0 0.0
    %629 = vmatprep.subr.mxu0 0.0
    %630 = vmatpush1.msra.mxu0 0.0
    %631 = vmatprep.subr.mxu0 0.0
    %632 = vmatpush1.msra.mxu0 0.0
    %633 = vmatprep.subr.mxu0 0.0
    %634 = vmatpush1.msra.mxu0 0.0
    %635 = vmatprep.subr.mxu0 0.0
    %636 = vmatpush1.msra.mxu0 0.0
    %637 = vmatprep.subr.mxu0 0.0
    %638 = vmatpush1.msra.mxu0 0.0
    %639 = vmatprep.subr.mxu0 0.0
    %640 = vmatpush1.msra.mxu0 0.0
    %641 = vmatprep.subr.mxu0 0.0
    %642 = vmatpush1.msra.mxu0 0.0
    %643 = vmatprep.subr.mxu0 0.0
    %644 = vmatpush1.msra.mxu0 0.0
    %645 = vmatprep.subr.mxu0 0.0
    %646 = vmatpush1.msra.mxu0 %v153
    %647 = vmatprep.subr.mxu0 0.0
    %648 = vmatpush1.msra.mxu0 %v152
    %649 = vmatprep.subr.mxu0 0.0
    %650 = vmatpush1.msra.mxu0 %v151
    %651 = vmatprep.subr.mxu0 0.0
    %652 = vmatpush1.msra.mxu0 %v150
    %653 = vmatprep.subr.mxu0 0.0
    %654 = vmatpush2.msra.mxu0 0.0
    %655 = vmatprep.subr.mxu0 0.0
    %656 = vmatpush2.msra.mxu0 0.0
    %657 = vmatprep.subr.mxu0 0.0
    %658 = vmatpush2.msra.mxu0 0.0
    %659 = vmatprep.subr.mxu0 0.0
    %660 = vmatpush2.msra.mxu0 0.0
    %661 = vmatprep.subr.mxu0 0.0
    %662 = vmatpush2.msra.mxu0 0.0
    %663 = vmatprep.subr.mxu0 0.0
    %664 = vmatpush2.msra.mxu0 0.0
    %665 = vmatprep.subr.mxu0 0.0
    %666 = vmatpush2.msra.mxu0 0.0
    %667 = vmatprep.subr.mxu0 0.0
    %668 = vmatpush2.msra.mxu0 0.0
    %669 = vmatprep.subr.mxu0 0.0
    %670 = vmatpush2.msra.mxu0 0.0
    %671 = vmatprep.subr.mxu0 0.0
    %672 = vmatpush2.msra.mxu0 0.0
    %673 = vmatprep.subr.mxu0 0.0
    %674 = vmatpush2.msra.mxu0 0.0
    %675 = vmatprep.subr.mxu0 0.0
    %676 = vmatpush2.msra.mxu0 0.0
    %677 = vmatprep.subr.mxu0 0.0
    %678 = vmatpush2.msra.mxu0 0.0
    %679 = vmatprep.subr.mxu0 0.0
    %680 = vmatpush2.msra.mxu0 0.0
    %681 = vmatprep.subr.mxu0 0.0
    %682 = vmatpush2.msra.mxu0 0.0
    %683 = vmatprep.subr.mxu0 0.0
    %684 = vmatpush2.msra.mxu0 0.0
    %685 = vmatprep.mubr.f32.mxu0 0.0
    %686 = vmatmul.mubr.f32.gmra.mxu0 %v619
    %v687 = vpop.f32.mrf.mxu0
    %v688 = vadd.f32 0.0, %v687
    %v689 = vpop.f32.mrf.mxu0
    %690 = vdwg.mxu0
    %v691 = vadd.f32 %v617, %v688
    %v692 = vtanh.pop %v691
    %693 = vst.msk [vmem:[#allocation3 + $0xc] sm:$0x3] %vm230, %v692
    %v694 = vld [vmem:[#allocation2 + $0xe] sm:$0x3]
    %v696 = vsel %vm147, %v692, 0
    %698 = vmatprep.subr.mxu0 0.0
    %699 = vmatpush1.msra.mxu0 0.0
    %700 = vmatprep.subr.mxu0 0.0
    %701 = vmatpush1.msra.mxu0 0.0
    %702 = vmatprep.subr.mxu0 0.0
    %703 = vmatpush1.msra.mxu0 0.0
    %704 = vmatprep.subr.mxu0 0.0
    %705 = vmatpush1.msra.mxu0 0.0
    %706 = vmatprep.subr.mxu0 0.0
    %707 = vmatpush1.msra.mxu0 0.0
    %708 = vmatprep.subr.mxu0 0.0
    %709 = vmatpush1.msra.mxu0 0.0
    %710 = vmatprep.subr.mxu0 0.0
    %711 = vmatpush1.msra.mxu0 0.0
    %712 = vmatprep.subr.mxu0 0.0
    %713 = vmatpush1.msra.mxu0 0.0
    %714 = vmatprep.subr.mxu0 0.0
    %715 = vmatpush1.msra.mxu0 0.0
    %716 = vmatprep.subr.mxu0 0.0
    %717 = vmatpush1.msra.mxu0 0.0
    %718 = vmatprep.subr.mxu0 0.0
    %719 = vmatpush1.msra.mxu0 0.0
    %720 = vmatprep.subr.mxu0 0.0
    %721 = vmatpush1.msra.mxu0 0.0
    %722 = vmatprep.subr.mxu0 0.0
    %723 = vmatpush1.msra.mxu0 %v153
    %724 = vmatprep.subr.mxu0 0.0
    %725 = vmatpush1.msra.mxu0 %v152
    %726 = vmatprep.subr.mxu0 0.0
    %727 = vmatpush1.msra.mxu0 %v151
    %728 = vmatprep.subr.mxu0 0.0
    %729 = vmatpush1.msra.mxu0 %v150
    %730 = vmatprep.subr.mxu0 0.0
    %731 = vmatpush2.msra.mxu0 0.0
    %732 = vmatprep.subr.mxu0 0.0
    %733 = vmatpush2.msra.mxu0 0.0
    %734 = vmatprep.subr.mxu0 0.0
    %735 = vmatpush2.msra.mxu0 0.0
    %736 = vmatprep.subr.mxu0 0.0
    %737 = vmatpush2.msra.mxu0 0.0
    %738 = vmatprep.subr.mxu0 0.0
    %739 = vmatpush2.msra.mxu0 0.0
    %740 = vmatprep.subr.mxu0 0.0
    %741 = vmatpush2.msra.mxu0 0.0
    %742 = vmatprep.subr.mxu0 0.0
    %743 = vmatpush2.msra.mxu0 0.0
    %744 = vmatprep.subr.mxu0 0.0
    %745 = vmatpush2.msra.mxu0 0.0
    %746 = vmatprep.subr.mxu0 0.0
    %747 = vmatpush2.msra.mxu0 0.0
    %748 = vmatprep.subr.mxu0 0.0
    %749 = vmatpush2.msra.mxu0 0.0
    %750 = vmatprep.subr.mxu0 0.0
    %751 = vmatpush2.msra.mxu0 0.0
    %752 = vmatprep.subr.mxu0 0.0
    %753 = vmatpush2.msra.mxu0 0.0
    %754 = vmatprep.subr.mxu0 0.0
    %755 = vmatpush2.msra.mxu0 0.0
    %756 = vmatprep.subr.mxu0 0.0
    %757 = vmatpush2.msra.mxu0 0.0
    %758 = vmatprep.subr.mxu0 0.0
    %759 = vmatpush2.msra.mxu0 0.0
    %760 = vmatprep.subr.mxu0 0.0
    %761 = vmatpush2.msra.mxu0 0.0
    %762 = vmatprep.mubr.f32.mxu0 0.0
    %763 = vmatmul.mubr.f32.gmra.mxu0 %v696
    %v764 = vpop.f32.mrf.mxu0
    %v765 = vadd.f32 0.0, %v764
    %v766 = vpop.f32.mrf.mxu0
    %767 = vdwg.mxu0
    %v768 = vadd.f32 %v694, %v765
    %v769 = vtanh.pop %v768
    %770 = vst.msk [vmem:[#allocation3 + $0xe] sm:$0x3] %vm230, %v769
    %v771 = vld [vmem:[#allocation3] sm:$0xff]
    %v772 = vld [vmem:[#allocation3 + $0x8] sm:$0xff]
    %s773 = scalar_lea.vmem [#allocation4], 32
    %v774 = vld [vmem:[%s773] sm:$0xff]
    %v775 = vld [vmem:[%s773 + $0x8] sm:$0xff]
    %v776 = vld [vmem:[%s773 + $0x10] sm:$0xff]
    %v777 = vld [vmem:[%s773 + $0x18] sm:$0xff]
    %s778 = scalar_lea.vmem %s3, 2
    %v779 = vld [vmem:[%s778] sm:$0x3]
    %v781 = vrot.slane %v779, 1
    %v783 = vadd.f32 %v779, %v781
    %v784 = vlaneseq
    %v785 = vshrl.u32 %v784, 7
    %v786 = vsub.s32 0, %v785
    %v787 = vrot.slane %v783, %v786
    %v789 = vsel %vm147, %v771, 0
    %v792 = vsel %vm147, %v772, 0
    %794 = vmatprep.subr.mxu0 0.0
    %795 = vmatpush1.msra.mxu0 0.0
    %796 = vmatprep.subr.mxu0 0.0
    %797 = vmatpush1.msra.mxu0 0.0
    %798 = vmatprep.subr.mxu0 0.0
    %799 = vmatpush1.msra.mxu0 0.0
    %800 = vmatprep.subr.mxu0 0.0
    %801 = vmatpush1.msra.mxu0 0.0
    %802 = vmatprep.subr.mxu0 0.0
    %803 = vmatpush1.msra.mxu0 0.0
    %804 = vmatprep.subr.mxu0 0.0
    %805 = vmatpush1.msra.mxu0 0.0
    %806 = vmatprep.subr.mxu0 0.0
    %807 = vmatpush1.msra.mxu0 0.0
    %808 = vmatprep.subr.mxu0 0.0
    %809 = vmatpush1.msra.mxu0 0.0
    %810 = vmatprep.subr.mxu0 0.0
    %811 = vmatpush1.msra.mxu0 0.0
    %812 = vmatprep.subr.mxu0 0.0
    %813 = vmatpush1.msra.mxu0 0.0
    %814 = vmatprep.subr.mxu0 0.0
    %815 = vmatpush1.msra.mxu0 0.0
    %816 = vmatprep.subr.mxu0 0.0
    %817 = vmatpush1.msra.mxu0 0.0
    %818 = vmatprep.subr.mxu0 0.0
    %819 = vmatpush1.msra.mxu0 %v777
    %820 = vmatprep.subr.mxu0 0.0
    %821 = vmatpush1.msra.mxu0 %v776
    %822 = vmatprep.subr.mxu0 0.0
    %823 = vmatpush1.msra.mxu0 %v775
    %824 = vmatprep.subr.mxu0 0.0
    %825 = vmatpush1.msra.mxu0 %v774
    %826 = vmatprep.subr.mxu0 0.0
    %827 = vmatpush2.msra.mxu0 0.0
    %828 = vmatprep.subr.mxu0 0.0
    %829 = vmatpush2.msra.mxu0 0.0
    %830 = vmatprep.subr.mxu0 0.0
    %831 = vmatpush2.msra.mxu0 0.0
    %832 = vmatprep.subr.mxu0 0.0
    %833 = vmatpush2.msra.mxu0 0.0
    %834 = vmatprep.subr.mxu0 0.0
    %835 = vmatpush2.msra.mxu0 0.0
    %836 = vmatprep.subr.mxu0 0.0
    %837 = vmatpush2.msra.mxu0 0.0
    %838 = vmatprep.subr.mxu0 0.0
    %839 = vmatpush2.msra.mxu0 0.0
    %840 = vmatprep.subr.mxu0 0.0
    %841 = vmatpush2.msra.mxu0 0.0
    %842 = vmatprep.subr.mxu0 0.0
    %843 = vmatpush2.msra.mxu0 0.0
    %844 = vmatprep.subr.mxu0 0.0
    %845 = vmatpush2.msra.mxu0 0.0
    %846 = vmatprep.subr.mxu0 0.0
    %847 = vmatpush2.msra.mxu0 0.0
    %848 = vmatprep.subr.mxu0 0.0
    %849 = vmatpush2.msra.mxu0 0.0
    %850 = vmatprep.subr.mxu0 0.0
    %851 = vmatpush2.msra.mxu0 0.0
    %852 = vmatprep.subr.mxu0 0.0
    %853 = vmatpush2.msra.mxu0 0.0
    %854 = vmatprep.subr.mxu0 0.0
    %855 = vmatpush2.msra.mxu0 0.0
    %856 = vmatprep.subr.mxu0 0.0
    %857 = vmatpush2.msra.mxu0 0.0
    %858 = vmatprep.mubr.f32.mxu0 0.0
    %859 = vmatmul.mubr.f32.gmra.mxu0 %v789
    %v860 = vpop.f32.mrf.mxu0
    %v861 = vadd.f32 %v787, %v860
    %v862 = vpop.f32.mrf.mxu0
    %863 = vmatprep.mubr.f32.mxu0 0.0
    %864 = vmatmul.mubr.f32.gmra.mxu0 %v792
    %v865 = vpop.f32.mrf.mxu0
    %v866 = vadd.f32 %v787, %v865
    %v867 = vpop.f32.mrf.mxu0
    %868 = vdwg.mxu0
    %869 = vst.msk [vmem:[#allocation2] sm:$0xff] %vm147, %v861
    %870 = vst.msk [vmem:[#allocation2 + $0x8] sm:$0xff] %vm147, %v866
    %s871 = scalar_lea.vmem [#allocation7], 32
    %v872 = vld [vmem:[%s871] sm:$0xff]
    %v873 = vld [vmem:[%s871 + $0x8] sm:$0xff]
    %v874 = vld [vmem:[%s871 + $0x10] sm:$0xff]
    %v875 = vld [vmem:[%s871 + $0x18] sm:$0xff]
    %v876 = vld [vmem:[#allocation2] sm:$0x3]
    %877 = vmatprep.subr.mxu0 0.0
    %878 = vmatpush1.msra.mxu0 0.0
    %879 = vmatprep.subr.mxu0 0.0
    %880 = vmatpush1.msra.mxu0 0.0
    %881 = vmatprep.subr.mxu0 0.0
    %882 = vmatpush1.msra.mxu0 0.0
    %883 = vmatprep.subr.mxu0 0.0
    %884 = vmatpush1.msra.mxu0 0.0
    %885 = vmatprep.subr.mxu0 0.0
    %886 = vmatpush1.msra.mxu0 0.0
    %887 = vmatprep.subr.mxu0 0.0
    %888 = vmatpush1.msra.mxu0 0.0
    %889 = vmatprep.subr.mxu0 0.0
    %890 = vmatpush1.msra.mxu0 0.0
    %891 = vmatprep.subr.mxu0 0.0
    %892 = vmatpush1.msra.mxu0 0.0
    %893 = vmatprep.subr.mxu0 0.0
    %894 = vmatpush1.msra.mxu0 0.0
    %895 = vmatprep.subr.mxu0 0.0
    %896 = vmatpush1.msra.mxu0 0.0
    %897 = vmatprep.subr.mxu0 0.0
    %898 = vmatpush1.msra.mxu0 0.0
    %899 = vmatprep.subr.mxu0 0.0
    %900 = vmatpush1.msra.mxu0 0.0
    %901 = vmatprep.subr.mxu0 0.0
    %902 = vmatpush1.msra.mxu0 %v875
    %903 = vmatprep.subr.mxu0 0.0
    %904 = vmatpush1.msra.mxu0 %v874
    %905 = vmatprep.subr.mxu0 0.0
    %906 = vmatpush1.msra.mxu0 %v873
    %907 = vmatprep.subr.mxu0 0.0
    %908 = vmatpush1.msra.mxu0 %v872
    %909 = vmatprep.subr.mxu0 0.0
    %910 = vmatpush2.msra.mxu0 0.0
    %911 = vmatprep.subr.mxu0 0.0
    %912 = vmatpush2.msra.mxu0 0.0
    %913 = vmatprep.subr.mxu0 0.0
    %914 = vmatpush2.msra.mxu0 0.0
    %915 = vmatprep.subr.mxu0 0.0
    %916 = vmatpush2.msra.mxu0 0.0
    %917 = vmatprep.subr.mxu0 0.0
    %918 = vmatpush2.msra.mxu0 0.0
    %919 = vmatprep.subr.mxu0 0.0
    %920 = vmatpush2.msra.mxu0 0.0
    %921 = vmatprep.subr.mxu0 0.0
    %922 = vmatpush2.msra.mxu0 0.0
    %923 = vmatprep.subr.mxu0 0.0
    %924 = vmatpush2.msra.mxu0 0.0
    %925 = vmatprep.subr.mxu0 0.0
    %926 = vmatpush2.msra.mxu0 0.0
    %927 = vmatprep.subr.mxu0 0.0
    %928 = vmatpush2.msra.mxu0 0.0
    %929 = vmatprep.subr.mxu0 0.0
    %930 = vmatpush2.msra.mxu0 0.0
    %931 = vmatprep.subr.mxu0 0.0
    %932 = vmatpush2.msra.mxu0 0.0
    %933 = vmatprep.subr.mxu0 0.0
    %934 = vmatpush2.msra.mxu0 0.0
    %935 = vmatprep.subr.mxu0 0.0
    %936 = vmatpush2.msra.mxu0 0.0
    %937 = vmatprep.subr.mxu0 0.0
    %938 = vmatpush2.msra.mxu0 0.0
    %939 = vmatprep.subr.mxu0 0.0
    %940 = vmatpush2.msra.mxu0 0.0
    %941 = vmatprep.mubr.f32.mxu0 0.0
    %942 = vmatmul.mubr.f32.gmra.mxu0 %v156
    %v943 = vpop.f32.mrf.mxu0
    %v944 = vadd.f32 0.0, %v943
    %v945 = vpop.f32.mrf.mxu0
    %946 = vdwg.mxu0
    %v947 = vadd.f32 %v876, %v944
    %v948 = vtanh.pop %v947
    %v949 = vld [vmem:[#allocation2 + $0x2] sm:$0x3]
    %v951 = vsel %vm147, %v948, 0
    %953 = vmatprep.subr.mxu0 0.0
    %954 = vmatpush1.msra.mxu0 0.0
    %955 = vmatprep.subr.mxu0 0.0
    %956 = vmatpush1.msra.mxu0 0.0
    %957 = vmatprep.subr.mxu0 0.0
    %958 = vmatpush1.msra.mxu0 0.0
    %959 = vmatprep.subr.mxu0 0.0
    %960 = vmatpush1.msra.mxu0 0.0
    %961 = vmatprep.subr.mxu0 0.0
    %962 = vmatpush1.msra.mxu0 0.0
    %963 = vmatprep.subr.mxu0 0.0
    %964 = vmatpush1.msra.mxu0 0.0
    %965 = vmatprep.subr.mxu0 0.0
    %966 = vmatpush1.msra.mxu0 0.0
    %967 = vmatprep.subr.mxu0 0.0
    %968 = vmatpush1.msra.mxu0 0.0
    %969 = vmatprep.subr.mxu0 0.0
    %970 = vmatpush1.msra.mxu0 0.0
    %971 = vmatprep.subr.mxu0 0.0
    %972 = vmatpush1.msra.mxu0 0.0
    %973 = vmatprep.subr.mxu0 0.0
    %974 = vmatpush1.msra.mxu0 0.0
    %975 = vmatprep.subr.mxu0 0.0
    %976 = vmatpush1.msra.mxu0 0.0
    %977 = vmatprep.subr.mxu0 0.0
    %978 = vmatpush1.msra.mxu0 %v875
    %979 = vmatprep.subr.mxu0 0.0
    %980 = vmatpush1.msra.mxu0 %v874
    %981 = vmatprep.subr.mxu0 0.0
    %982 = vmatpush1.msra.mxu0 %v873
    %983 = vmatprep.subr.mxu0 0.0
    %984 = vmatpush1.msra.mxu0 %v872
    %985 = vmatprep.subr.mxu0 0.0
    %986 = vmatpush2.msra.mxu0 0.0
    %987 = vmatprep.subr.mxu0 0.0
    %988 = vmatpush2.msra.mxu0 0.0
    %989 = vmatprep.subr.mxu0 0.0
    %990 = vmatpush2.msra.mxu0 0.0
    %991 = vmatprep.subr.mxu0 0.0
    %992 = vmatpush2.msra.mxu0 0.0
    %993 = vmatprep.subr.mxu0 0.0
    %994 = vmatpush2.msra.mxu0 0.0
    %995 = vmatprep.subr.mxu0 0.0
    %996 = vmatpush2.msra.mxu0 0.0
    %997 = vmatprep.subr.mxu0 0.0
    %998 = vmatpush2.msra.mxu0 0.0
    %999 = vmatprep.subr.mxu0 0.0
    %1000 = vmatpush2.msra.mxu0 0.0
    %1001 = vmatprep.subr.mxu0 0.0
    %1002 = vmatpush2.msra.mxu0 0.0
    %1003 = vmatprep.subr.mxu0 0.0
    %1004 = vmatpush2.msra.mxu0 0.0
    %1005 = vmatprep.subr.mxu0 0.0
    %1006 = vmatpush2.msra.mxu0 0.0
    %1007 = vmatprep.subr.mxu0 0.0
    %1008 = vmatpush2.msra.mxu0 0.0
    %1009 = vmatprep.subr.mxu0 0.0
    %1010 = vmatpush2.msra.mxu0 0.0
    %1011 = vmatprep.subr.mxu0 0.0
    %1012 = vmatpush2.msra.mxu0 0.0
    %1013 = vmatprep.subr.mxu0 0.0
    %1014 = vmatpush2.msra.mxu0 0.0
    %1015 = vmatprep.subr.mxu0 0.0
    %1016 = vmatpush2.msra.mxu0 0.0
    %1017 = vmatprep.mubr.f32.mxu0 0.0
    %1018 = vmatmul.mubr.f32.gmra.mxu0 %v951
    %v1019 = vpop.f32.mrf.mxu0
    %v1020 = vadd.f32 0.0, %v1019
    %v1021 = vpop.f32.mrf.mxu0
    %1022 = vdwg.mxu0
    %v1023 = vadd.f32 %v949, %v1020
    %v1024 = vtanh.pop %v1023
    %v1025 = vld [vmem:[#allocation2 + $0x4] sm:$0x3]
    %v1027 = vsel %vm147, %v1024, 0
    %1029 = vmatprep.subr.mxu0 0.0
    %1030 = vmatpush1.msra.mxu0 0.0
    %1031 = vmatprep.subr.mxu0 0.0
    %1032 = vmatpush1.msra.mxu0 0.0
    %1033 = vmatprep.subr.mxu0 0.0
    %1034 = vmatpush1.msra.mxu0 0.0
    %1035 = vmatprep.subr.mxu0 0.0
    %1036 = vmatpush1.msra.mxu0 0.0
    %1037 = vmatprep.subr.mxu0 0.0
    %1038 = vmatpush1.msra.mxu0 0.0
    %1039 = vmatprep.subr.mxu0 0.0
    %1040 = vmatpush1.msra.mxu0 0.0
    %1041 = vmatprep.subr.mxu0 0.0
    %1042 = vmatpush1.msra.mxu0 0.0
    %1043 = vmatprep.subr.mxu0 0.0
    %1044 = vmatpush1.msra.mxu0 0.0
    %1045 = vmatprep.subr.mxu0 0.0
    %1046 = vmatpush1.msra.mxu0 0.0
    %1047 = vmatprep.subr.mxu0 0.0
    %1048 = vmatpush1.msra.mxu0 0.0
    %1049 = vmatprep.subr.mxu0 0.0
    %1050 = vmatpush1.msra.mxu0 0.0
    %1051 = vmatprep.subr.mxu0 0.0
    %1052 = vmatpush1.msra.mxu0 0.0
    %1053 = vmatprep.subr.mxu0 0.0
    %1054 = vmatpush1.msra.mxu0 %v875
    %1055 = vmatprep.subr.mxu0 0.0
    %1056 = vmatpush1.msra.mxu0 %v874
    %1057 = vmatprep.subr.mxu0 0.0
    %1058 = vmatpush1.msra.mxu0 %v873
    %1059 = vmatprep.subr.mxu0 0.0
    %1060 = vmatpush1.msra.mxu0 %v872
    %1061 = vmatprep.subr.mxu0 0.0
    %1062 = vmatpush2.msra.mxu0 0.0
    %1063 = vmatprep.subr.mxu0 0.0
    %1064 = vmatpush2.msra.mxu0 0.0
    %1065 = vmatprep.subr.mxu0 0.0
    %1066 = vmatpush2.msra.mxu0 0.0
    %1067 = vmatprep.subr.mxu0 0.0
    %1068 = vmatpush2.msra.mxu0 0.0
    %1069 = vmatprep.subr.mxu0 0.0
    %1070 = vmatpush2.msra.mxu0 0.0
    %1071 = vmatprep.subr.mxu0 0.0
    %1072 = vmatpush2.msra.mxu0 0.0
    %1073 = vmatprep.subr.mxu0 0.0
    %1074 = vmatpush2.msra.mxu0 0.0
    %1075 = vmatprep.subr.mxu0 0.0
    %1076 = vmatpush2.msra.mxu0 0.0
    %1077 = vmatprep.subr.mxu0 0.0
    %1078 = vmatpush2.msra.mxu0 0.0
    %1079 = vmatprep.subr.mxu0 0.0
    %1080 = vmatpush2.msra.mxu0 0.0
    %1081 = vmatprep.subr.mxu0 0.0
    %1082 = vmatpush2.msra.mxu0 0.0
    %1083 = vmatprep.subr.mxu0 0.0
    %1084 = vmatpush2.msra.mxu0 0.0
    %1085 = vmatprep.subr.mxu0 0.0
    %1086 = vmatpush2.msra.mxu0 0.0
    %1087 = vmatprep.subr.mxu0 0.0
    %1088 = vmatpush2.msra.mxu0 0.0
    %1089 = vmatprep.subr.mxu0 0.0
    %1090 = vmatpush2.msra.mxu0 0.0
    %1091 = vmatprep.subr.mxu0 0.0
    %1092 = vmatpush2.msra.mxu0 0.0
    %1093 = vmatprep.mubr.f32.mxu0 0.0
    %1094 = vmatmul.mubr.f32.gmra.mxu0 %v1027
    %v1095 = vpop.f32.mrf.mxu0
    %v1096 = vadd.f32 0.0, %v1095
    %v1097 = vpop.f32.mrf.mxu0
    %1098 = vdwg.mxu0
    %v1099 = vadd.f32 %v1025, %v1096
    %v1100 = vtanh.pop %v1099
    %v1101 = vld [vmem:[#allocation2 + $0x6] sm:$0x3]
    %v1103 = vsel %vm147, %v1100, 0
    %1105 = vmatprep.subr.mxu0 0.0
    %1106 = vmatpush1.msra.mxu0 0.0
    %1107 = vmatprep.subr.mxu0 0.0
    %1108 = vmatpush1.msra.mxu0 0.0
    %1109 = vmatprep.subr.mxu0 0.0
    %1110 = vmatpush1.msra.mxu0 0.0
    %1111 = vmatprep.subr.mxu0 0.0
    %1112 = vmatpush1.msra.mxu0 0.0
    %1113 = vmatprep.subr.mxu0 0.0
    %1114 = vmatpush1.msra.mxu0 0.0
    %1115 = vmatprep.subr.mxu0 0.0
    %1116 = vmatpush1.msra.mxu0 0.0
    %1117 = vmatprep.subr.mxu0 0.0
    %1118 = vmatpush1.msra.mxu0 0.0
    %1119 = vmatprep.subr.mxu0 0.0
    %1120 = vmatpush1.msra.mxu0 0.0
    %1121 = vmatprep.subr.mxu0 0.0
    %1122 = vmatpush1.msra.mxu0 0.0
    %1123 = vmatprep.subr.mxu0 0.0
    %1124 = vmatpush1.msra.mxu0 0.0
    %1125 = vmatprep.subr.mxu0 0.0
    %1126 = vmatpush1.msra.mxu0 0.0
    %1127 = vmatprep.subr.mxu0 0.0
    %1128 = vmatpush1.msra.mxu0 0.0
    %1129 = vmatprep.subr.mxu0 0.0
    %1130 = vmatpush1.msra.mxu0 %v875
    %1131 = vmatprep.subr.mxu0 0.0
    %1132 = vmatpush1.msra.mxu0 %v874
    %1133 = vmatprep.subr.mxu0 0.0
    %1134 = vmatpush1.msra.mxu0 %v873
    %1135 = vmatprep.subr.mxu0 0.0
    %1136 = vmatpush1.msra.mxu0 %v872
    %1137 = vmatprep.subr.mxu0 0.0
    %1138 = vmatpush2.msra.mxu0 0.0
    %1139 = vmatprep.subr.mxu0 0.0
    %1140 = vmatpush2.msra.mxu0 0.0
    %1141 = vmatprep.subr.mxu0 0.0
    %1142 = vmatpush2.msra.mxu0 0.0
    %1143 = vmatprep.subr.mxu0 0.0
    %1144 = vmatpush2.msra.mxu0 0.0
    %1145 = vmatprep.subr.mxu0 0.0
    %1146 = vmatpush2.msra.mxu0 0.0
    %1147 = vmatprep.subr.mxu0 0.0
    %1148 = vmatpush2.msra.mxu0 0.0
    %1149 = vmatprep.subr.mxu0 0.0
    %1150 = vmatpush2.msra.mxu0 0.0
    %1151 = vmatprep.subr.mxu0 0.0
    %1152 = vmatpush2.msra.mxu0 0.0
    %1153 = vmatprep.subr.mxu0 0.0
    %1154 = vmatpush2.msra.mxu0 0.0
    %1155 = vmatprep.subr.mxu0 0.0
    %1156 = vmatpush2.msra.mxu0 0.0
    %1157 = vmatprep.subr.mxu0 0.0
    %1158 = vmatpush2.msra.mxu0 0.0
    %1159 = vmatprep.subr.mxu0 0.0
    %1160 = vmatpush2.msra.mxu0 0.0
    %1161 = vmatprep.subr.mxu0 0.0
    %1162 = vmatpush2.msra.mxu0 0.0
    %1163 = vmatprep.subr.mxu0 0.0
    %1164 = vmatpush2.msra.mxu0 0.0
    %1165 = vmatprep.subr.mxu0 0.0
    %1166 = vmatpush2.msra.mxu0 0.0
    %1167 = vmatprep.subr.mxu0 0.0
    %1168 = vmatpush2.msra.mxu0 0.0
    %1169 = vmatprep.mubr.f32.mxu0 0.0
    %1170 = vmatmul.mubr.f32.gmra.mxu0 %v1103
    %v1171 = vpop.f32.mrf.mxu0
    %v1172 = vadd.f32 0.0, %v1171
    %v1173 = vpop.f32.mrf.mxu0
    %1174 = vdwg.mxu0
    %v1175 = vadd.f32 %v1101, %v1172
    %v1176 = vtanh.pop %v1175
    %v1177 = vld [vmem:[#allocation2 + $0x8] sm:$0x3]
    %v1179 = vsel %vm147, %v1176, 0
    %1181 = vmatprep.subr.mxu0 0.0
    %1182 = vmatpush1.msra.mxu0 0.0
    %1183 = vmatprep.subr.mxu0 0.0
    %1184 = vmatpush1.msra.mxu0 0.0
    %1185 = vmatprep.subr.mxu0 0.0
    %1186 = vmatpush1.msra.mxu0 0.0
    %1187 = vmatprep.subr.mxu0 0.0
    %1188 = vmatpush1.msra.mxu0 0.0
    %1189 = vmatprep.subr.mxu0 0.0
    %1190 = vmatpush1.msra.mxu0 0.0
    %1191 = vmatprep.subr.mxu0 0.0
    %1192 = vmatpush1.msra.mxu0 0.0
    %1193 = vmatprep.subr.mxu0 0.0
    %1194 = vmatpush1.msra.mxu0 0.0
    %1195 = vmatprep.subr.mxu0 0.0
    %1196 = vmatpush1.msra.mxu0 0.0
    %1197 = vmatprep.subr.mxu0 0.0
    %1198 = vmatpush1.msra.mxu0 0.0
    %1199 = vmatprep.subr.mxu0 0.0
    %1200 = vmatpush1.msra.mxu0 0.0
    %1201 = vmatprep.subr.mxu0 0.0
    %1202 = vmatpush1.msra.mxu0 0.0
    %1203 = vmatprep.subr.mxu0 0.0
    %1204 = vmatpush1.msra.mxu0 0.0
    %1205 = vmatprep.subr.mxu0 0.0
    %1206 = vmatpush1.msra.mxu0 %v875
    %1207 = vmatprep.subr.mxu0 0.0
    %1208 = vmatpush1.msra.mxu0 %v874
    %1209 = vmatprep.subr.mxu0 0.0
    %1210 = vmatpush1.msra.mxu0 %v873
    %1211 = vmatprep.subr.mxu0 0.0
    %1212 = vmatpush1.msra.mxu0 %v872
    %1213 = vmatprep.subr.mxu0 0.0
    %1214 = vmatpush2.msra.mxu0 0.0
    %1215 = vmatprep.subr.mxu0 0.0
    %1216 = vmatpush2.msra.mxu0 0.0
    %1217 = vmatprep.subr.mxu0 0.0
    %1218 = vmatpush2.msra.mxu0 0.0
    %1219 = vmatprep.subr.mxu0 0.0
    %1220 = vmatpush2.msra.mxu0 0.0
    %1221 = vmatprep.subr.mxu0 0.0
    %1222 = vmatpush2.msra.mxu0 0.0
    %1223 = vmatprep.subr.mxu0 0.0
    %1224 = vmatpush2.msra.mxu0 0.0
    %1225 = vmatprep.subr.mxu0 0.0
    %1226 = vmatpush2.msra.mxu0 0.0
    %1227 = vmatprep.subr.mxu0 0.0
    %1228 = vmatpush2.msra.mxu0 0.0
    %1229 = vmatprep.subr.mxu0 0.0
    %1230 = vmatpush2.msra.mxu0 0.0
    %1231 = vmatprep.subr.mxu0 0.0
    %1232 = vmatpush2.msra.mxu0 0.0
    %1233 = vmatprep.subr.mxu0 0.0
    %1234 = vmatpush2.msra.mxu0 0.0
    %1235 = vmatprep.subr.mxu0 0.0
    %1236 = vmatpush2.msra.mxu0 0.0
    %1237 = vmatprep.subr.mxu0 0.0
    %1238 = vmatpush2.msra.mxu0 0.0
    %1239 = vmatprep.subr.mxu0 0.0
    %1240 = vmatpush2.msra.mxu0 0.0
    %1241 = vmatprep.subr.mxu0 0.0
    %1242 = vmatpush2.msra.mxu0 0.0
    %1243 = vmatprep.subr.mxu0 0.0
    %1244 = vmatpush2.msra.mxu0 0.0
    %1245 = vmatprep.mubr.f32.mxu0 0.0
    %1246 = vmatmul.mubr.f32.gmra.mxu0 %v1179
    %v1247 = vpop.f32.mrf.mxu0
    %v1248 = vadd.f32 0.0, %v1247
    %v1249 = vpop.f32.mrf.mxu0
    %1250 = vdwg.mxu0
    %v1251 = vadd.f32 %v1177, %v1248
    %v1252 = vtanh.pop %v1251
    %v1253 = vld [vmem:[#allocation2 + $0xa] sm:$0x3]
    %v1255 = vsel %vm147, %v1252, 0
    %1257 = vmatprep.subr.mxu0 0.0
    %1258 = vmatpush1.msra.mxu0 0.0
    %1259 = vmatprep.subr.mxu0 0.0
    %1260 = vmatpush1.msra.mxu0 0.0
    %1261 = vmatprep.subr.mxu0 0.0
    %1262 = vmatpush1.msra.mxu0 0.0
    %1263 = vmatprep.subr.mxu0 0.0
    %1264 = vmatpush1.msra.mxu0 0.0
    %1265 = vmatprep.subr.mxu0 0.0
    %1266 = vmatpush1.msra.mxu0 0.0
    %1267 = vmatprep.subr.mxu0 0.0
    %1268 = vmatpush1.msra.mxu0 0.0
    %1269 = vmatprep.subr.mxu0 0.0
    %1270 = vmatpush1.msra.mxu0 0.0
    %1271 = vmatprep.subr.mxu0 0.0
    %1272 = vmatpush1.msra.mxu0 0.0
    %1273 = vmatprep.subr.mxu0 0.0
    %1274 = vmatpush1.msra.mxu0 0.0
    %1275 = vmatprep.subr.mxu0 0.0
    %1276 = vmatpush1.msra.mxu0 0.0
    %1277 = vmatprep.subr.mxu0 0.0
    %1278 = vmatpush1.msra.mxu0 0.0
    %1279 = vmatprep.subr.mxu0 0.0
    %1280 = vmatpush1.msra.mxu0 0.0
    %1281 = vmatprep.subr.mxu0 0.0
    %1282 = vmatpush1.msra.mxu0 %v875
    %1283 = vmatprep.subr.mxu0 0.0
    %1284 = vmatpush1.msra.mxu0 %v874
    %1285 = vmatprep.subr.mxu0 0.0
    %1286 = vmatpush1.msra.mxu0 %v873
    %1287 = vmatprep.subr.mxu0 0.0
    %1288 = vmatpush1.msra.mxu0 %v872
    %1289 = vmatprep.subr.mxu0 0.0
    %1290 = vmatpush2.msra.mxu0 0.0
    %1291 = vmatprep.subr.mxu0 0.0
    %1292 = vmatpush2.msra.mxu0 0.0
    %1293 = vmatprep.subr.mxu0 0.0
    %1294 = vmatpush2.msra.mxu0 0.0
    %1295 = vmatprep.subr.mxu0 0.0
    %1296 = vmatpush2.msra.mxu0 0.0
    %1297 = vmatprep.subr.mxu0 0.0
    %1298 = vmatpush2.msra.mxu0 0.0
    %1299 = vmatprep.subr.mxu0 0.0
    %1300 = vmatpush2.msra.mxu0 0.0
    %1301 = vmatprep.subr.mxu0 0.0
    %1302 = vmatpush2.msra.mxu0 0.0
    %1303 = vmatprep.subr.mxu0 0.0
    %1304 = vmatpush2.msra.mxu0 0.0
    %1305 = vmatprep.subr.mxu0 0.0
    %1306 = vmatpush2.msra.mxu0 0.0
    %1307 = vmatprep.subr.mxu0 0.0
    %1308 = vmatpush2.msra.mxu0 0.0
    %1309 = vmatprep.subr.mxu0 0.0
    %1310 = vmatpush2.msra.mxu0 0.0
    %1311 = vmatprep.subr.mxu0 0.0
    %1312 = vmatpush2.msra.mxu0 0.0
    %1313 = vmatprep.subr.mxu0 0.0
    %1314 = vmatpush2.msra.mxu0 0.0
    %1315 = vmatprep.subr.mxu0 0.0
    %1316 = vmatpush2.msra.mxu0 0.0
    %1317 = vmatprep.subr.mxu0 0.0
    %1318 = vmatpush2.msra.mxu0 0.0
    %1319 = vmatprep.subr.mxu0 0.0
    %1320 = vmatpush2.msra.mxu0 0.0
    %1321 = vmatprep.mubr.f32.mxu0 0.0
    %1322 = vmatmul.mubr.f32.gmra.mxu0 %v1255
    %v1323 = vpop.f32.mrf.mxu0
    %v1324 = vadd.f32 0.0, %v1323
    %v1325 = vpop.f32.mrf.mxu0
    %1326 = vdwg.mxu0
    %v1327 = vadd.f32 %v1253, %v1324
    %v1328 = vtanh.pop %v1327
    %v1329 = vld [vmem:[#allocation2 + $0xc] sm:$0x3]
    %v1331 = vsel %vm147, %v1328, 0
    %1333 = vmatprep.subr.mxu0 0.0
    %1334 = vmatpush1.msra.mxu0 0.0
    %1335 = vmatprep.subr.mxu0 0.0
    %1336 = vmatpush1.msra.mxu0 0.0
    %1337 = vmatprep.subr.mxu0 0.0
    %1338 = vmatpush1.msra.mxu0 0.0
    %1339 = vmatprep.subr.mxu0 0.0
    %1340 = vmatpush1.msra.mxu0 0.0
    %1341 = vmatprep.subr.mxu0 0.0
    %1342 = vmatpush1.msra.mxu0 0.0
    %1343 = vmatprep.subr.mxu0 0.0
    %1344 = vmatpush1.msra.mxu0 0.0
    %1345 = vmatprep.subr.mxu0 0.0
    %1346 = vmatpush1.msra.mxu0 0.0
    %1347 = vmatprep.subr.mxu0 0.0
    %1348 = vmatpush1.msra.mxu0 0.0
    %1349 = vmatprep.subr.mxu0 0.0
    %1350 = vmatpush1.msra.mxu0 0.0
    %1351 = vmatprep.subr.mxu0 0.0
    %1352 = vmatpush1.msra.mxu0 0.0
    %1353 = vmatprep.subr.mxu0 0.0
    %1354 = vmatpush1.msra.mxu0 0.0
    %1355 = vmatprep.subr.mxu0 0.0
    %1356 = vmatpush1.msra.mxu0 0.0
    %1357 = vmatprep.subr.mxu0 0.0
    %1358 = vmatpush1.msra.mxu0 %v875
    %1359 = vmatprep.subr.mxu0 0.0
    %1360 = vmatpush1.msra.mxu0 %v874
    %1361 = vmatprep.subr.mxu0 0.0
    %1362 = vmatpush1.msra.mxu0 %v873
    %1363 = vmatprep.subr.mxu0 0.0
    %1364 = vmatpush1.msra.mxu0 %v872
    %1365 = vmatprep.subr.mxu0 0.0
    %1366 = vmatpush2.msra.mxu0 0.0
    %1367 = vmatprep.subr.mxu0 0.0
    %1368 = vmatpush2.msra.mxu0 0.0
    %1369 = vmatprep.subr.mxu0 0.0
    %1370 = vmatpush2.msra.mxu0 0.0
    %1371 = vmatprep.subr.mxu0 0.0
    %1372 = vmatpush2.msra.mxu0 0.0
    %1373 = vmatprep.subr.mxu0 0.0
    %1374 = vmatpush2.msra.mxu0 0.0
    %1375 = vmatprep.subr.mxu0 0.0
    %1376 = vmatpush2.msra.mxu0 0.0
    %1377 = vmatprep.subr.mxu0 0.0
    %1378 = vmatpush2.msra.mxu0 0.0
    %1379 = vmatprep.subr.mxu0 0.0
    %1380 = vmatpush2.msra.mxu0 0.0
    %1381 = vmatprep.subr.mxu0 0.0
    %1382 = vmatpush2.msra.mxu0 0.0
    %1383 = vmatprep.subr.mxu0 0.0
    %1384 = vmatpush2.msra.mxu0 0.0
    %1385 = vmatprep.subr.mxu0 0.0
    %1386 = vmatpush2.msra.mxu0 0.0
    %1387 = vmatprep.subr.mxu0 0.0
    %1388 = vmatpush2.msra.mxu0 0.0
    %1389 = vmatprep.subr.mxu0 0.0
    %1390 = vmatpush2.msra.mxu0 0.0
    %1391 = vmatprep.subr.mxu0 0.0
    %1392 = vmatpush2.msra.mxu0 0.0
    %1393 = vmatprep.subr.mxu0 0.0
    %1394 = vmatpush2.msra.mxu0 0.0
    %1395 = vmatprep.subr.mxu0 0.0
    %1396 = vmatpush2.msra.mxu0 0.0
    %1397 = vmatprep.mubr.f32.mxu0 0.0
    %1398 = vmatmul.mubr.f32.gmra.mxu0 %v1331
    %v1399 = vpop.f32.mrf.mxu0
    %v1400 = vadd.f32 0.0, %v1399
    %v1401 = vpop.f32.mrf.mxu0
    %1402 = vdwg.mxu0
    %v1403 = vadd.f32 %v1329, %v1400
    %v1404 = vtanh.pop %v1403
    %v1405 = vld [vmem:[#allocation2 + $0xe] sm:$0x3]
    %v1407 = vsel %vm147, %v1404, 0
    %1409 = vmatprep.subr.mxu0 0.0
    %1410 = vmatpush1.msra.mxu0 0.0
    %1411 = vmatprep.subr.mxu0 0.0
    %1412 = vmatpush1.msra.mxu0 0.0
    %1413 = vmatprep.subr.mxu0 0.0
    %1414 = vmatpush1.msra.mxu0 0.0
    %1415 = vmatprep.subr.mxu0 0.0
    %1416 = vmatpush1.msra.mxu0 0.0
    %1417 = vmatprep.subr.mxu0 0.0
    %1418 = vmatpush1.msra.mxu0 0.0
    %1419 = vmatprep.subr.mxu0 0.0
    %1420 = vmatpush1.msra.mxu0 0.0
    %1421 = vmatprep.subr.mxu0 0.0
    %1422 = vmatpush1.msra.mxu0 0.0
    %1423 = vmatprep.subr.mxu0 0.0
    %1424 = vmatpush1.msra.mxu0 0.0
    %1425 = vmatprep.subr.mxu0 0.0
    %1426 = vmatpush1.msra.mxu0 0.0
    %1427 = vmatprep.subr.mxu0 0.0
    %1428 = vmatpush1.msra.mxu0 0.0
    %1429 = vmatprep.subr.mxu0 0.0
    %1430 = vmatpush1.msra.mxu0 0.0
    %1431 = vmatprep.subr.mxu0 0.0
    %1432 = vmatpush1.msra.mxu0 0.0
    %1433 = vmatprep.subr.mxu0 0.0
    %1434 = vmatpush1.msra.mxu0 %v875
    %1435 = vmatprep.subr.mxu0 0.0
    %1436 = vmatpush1.msra.mxu0 %v874
    %1437 = vmatprep.subr.mxu0 0.0
    %1438 = vmatpush1.msra.mxu0 %v873
    %1439 = vmatprep.subr.mxu0 0.0
    %1440 = vmatpush1.msra.mxu0 %v872
    %1441 = vmatprep.subr.mxu0 0.0
    %1442 = vmatpush2.msra.mxu0 0.0
    %1443 = vmatprep.subr.mxu0 0.0
    %1444 = vmatpush2.msra.mxu0 0.0
    %1445 = vmatprep.subr.mxu0 0.0
    %1446 = vmatpush2.msra.mxu0 0.0
    %1447 = vmatprep.subr.mxu0 0.0
    %1448 = vmatpush2.msra.mxu0 0.0
    %1449 = vmatprep.subr.mxu0 0.0
    %1450 = vmatpush2.msra.mxu0 0.0
    %1451 = vmatprep.subr.mxu0 0.0
    %1452 = vmatpush2.msra.mxu0 0.0
    %1453 = vmatprep.subr.mxu0 0.0
    %1454 = vmatpush2.msra.mxu0 0.0
    %1455 = vmatprep.subr.mxu0 0.0
    %1456 = vmatpush2.msra.mxu0 0.0
    %1457 = vmatprep.subr.mxu0 0.0
    %1458 = vmatpush2.msra.mxu0 0.0
    %1459 = vmatprep.subr.mxu0 0.0
    %1460 = vmatpush2.msra.mxu0 0.0
    %1461 = vmatprep.subr.mxu0 0.0
    %1462 = vmatpush2.msra.mxu0 0.0
    %1463 = vmatprep.subr.mxu0 0.0
    %1464 = vmatpush2.msra.mxu0 0.0
    %1465 = vmatprep.subr.mxu0 0.0
    %1466 = vmatpush2.msra.mxu0 0.0
    %1467 = vmatprep.subr.mxu0 0.0
    %1468 = vmatpush2.msra.mxu0 0.0
    %1469 = vmatprep.subr.mxu0 0.0
    %1470 = vmatpush2.msra.mxu0 0.0
    %1471 = vmatprep.subr.mxu0 0.0
    %1472 = vmatpush2.msra.mxu0 0.0
    %1473 = vmatprep.mubr.f32.mxu0 0.0
    %1474 = vmatmul.mubr.f32.gmra.mxu0 %v1407
    %v1475 = vpop.f32.mrf.mxu0
    %v1476 = vadd.f32 0.0, %v1475
    %v1477 = vpop.f32.mrf.mxu0
    %1478 = vdwg.mxu0
    %v1479 = vadd.f32 %v1405, %v1476
    %v1480 = vtanh.pop %v1479
    %v1481 = vld [vmem:[%s4] sm:$0xff]
    %v1482 = vld [vmem:[%s4 + $0x8] sm:$0xff]
    %v1483 = vld [vmem:[%s4 + $0x10] sm:$0xff]
    %v1484 = vld [vmem:[%s4 + $0x18] sm:$0xff]
    %v1485 = vld [vmem:[%s5] sm:$0x1]
    %v1487 = vlaneseq
    %v1488 = vshrl.u32 %v1487, 7
    %v1489 = vsub.s32 0, %v1488
    %v1490 = vrot.slane %v1485, %v1489
    %v1493 = vsel %vm147, %v1480, 0
    %1495 = vmatprep.subr.mxu0 0.0
    %1496 = vmatpush1.msra.mxu0 0.0
    %1497 = vmatprep.subr.mxu0 0.0
    %1498 = vmatpush1.msra.mxu0 0.0
    %1499 = vmatprep.subr.mxu0 0.0
    %1500 = vmatpush1.msra.mxu0 0.0
    %1501 = vmatprep.subr.mxu0 0.0
    %1502 = vmatpush1.msra.mxu0 0.0
    %1503 = vmatprep.subr.mxu0 0.0
    %1504 = vmatpush1.msra.mxu0 0.0
    %1505 = vmatprep.subr.mxu0 0.0
    %1506 = vmatpush1.msra.mxu0 0.0
    %1507 = vmatprep.subr.mxu0 0.0
    %1508 = vmatpush1.msra.mxu0 0.0
    %1509 = vmatprep.subr.mxu0 0.0
    %1510 = vmatpush1.msra.mxu0 0.0
    %1511 = vmatprep.subr.mxu0 0.0
    %1512 = vmatpush1.msra.mxu0 0.0
    %1513 = vmatprep.subr.mxu0 0.0
    %1514 = vmatpush1.msra.mxu0 0.0
    %1515 = vmatprep.subr.mxu0 0.0
    %1516 = vmatpush1.msra.mxu0 0.0
    %1517 = vmatprep.subr.mxu0 0.0
    %1518 = vmatpush1.msra.mxu0 0.0
    %1519 = vmatprep.subr.mxu0 0.0
    %1520 = vmatpush1.msra.mxu0 %v1484
    %1521 = vmatprep.subr.mxu0 0.0
    %1522 = vmatpush1.msra.mxu0 %v1483
    %1523 = vmatprep.subr.mxu0 0.0
    %1524 = vmatpush1.msra.mxu0 %v1482
    %1525 = vmatprep.subr.mxu0 0.0
    %1526 = vmatpush1.msra.mxu0 %v1481
    %1527 = vmatprep.subr.mxu0 0.0
    %1528 = vmatpush2.msra.mxu0 0.0
    %1529 = vmatprep.subr.mxu0 0.0
    %1530 = vmatpush2.msra.mxu0 0.0
    %1531 = vmatprep.subr.mxu0 0.0
    %1532 = vmatpush2.msra.mxu0 0.0
    %1533 = vmatprep.subr.mxu0 0.0
    %1534 = vmatpush2.msra.mxu0 0.0
    %1535 = vmatprep.subr.mxu0 0.0
    %1536 = vmatpush2.msra.mxu0 0.0
    %1537 = vmatprep.subr.mxu0 0.0
    %1538 = vmatpush2.msra.mxu0 0.0
    %1539 = vmatprep.subr.mxu0 0.0
    %1540 = vmatpush2.msra.mxu0 0.0
    %1541 = vmatprep.subr.mxu0 0.0
    %1542 = vmatpush2.msra.mxu0 0.0
    %1543 = vmatprep.subr.mxu0 0.0
    %1544 = vmatpush2.msra.mxu0 0.0
    %1545 = vmatprep.subr.mxu0 0.0
    %1546 = vmatpush2.msra.mxu0 0.0
    %1547 = vmatprep.subr.mxu0 0.0
    %1548 = vmatpush2.msra.mxu0 0.0
    %1549 = vmatprep.subr.mxu0 0.0
    %1550 = vmatpush2.msra.mxu0 0.0
    %1551 = vmatprep.subr.mxu0 0.0
    %1552 = vmatpush2.msra.mxu0 0.0
    %1553 = vmatprep.subr.mxu0 0.0
    %1554 = vmatpush2.msra.mxu0 0.0
    %1555 = vmatprep.subr.mxu0 0.0
    %1556 = vmatpush2.msra.mxu0 0.0
    %1557 = vmatprep.subr.mxu0 0.0
    %1558 = vmatpush2.msra.mxu0 0.0
    %1559 = vmatprep.mubr.f32.mxu0 0.0
    %1560 = vmatmul.mubr.f32.gmra.mxu0 %v1493
    %v1561 = vpop.f32.mrf.mxu0
    %v1562 = vadd.f32 %v1490, %v1561
    %v1563 = vpop.f32.mrf.mxu0
    %1564 = vdwg.mxu0
    %vm1565 = vcmask 25600
    %1566 = vst.msk [vmem:[#allocation9] sm:$0x3] %vm1565, %v1562
    // Predicated region
    $region34: #{tpu_custom_call.1} parent=1 // pred_check
      _
    $region35: #{tpu_custom_call.1} parent=1 // pred_check_branch
      %1568 = sbr.rel (0) target = $region37
    $region36: #{tpu_custom_call.1} parent=1 // pred_region
      %s1570 = ssub.s32 32, 32
      %1571 = vsyncadd [#allocation6], %s1570
      %s1573 = sshll.u32 [#allocation9], 4
      %s1574 = int_to_ptr.vmem [resolvable:$true] %s1573
      %1576 = dma.vmem_to_hbm [thread:$0]  %s1574, 32, %s6, [#allocation6]
    $region37: #{tpu_custom_call.1} parent=1 // pred_fallthru
      _
    // Predicated region
    $region38: #{tpu_custom_call.1} parent=1 // pred_check
      _
    $region39: #{tpu_custom_call.1} parent=1 // pred_check_branch
      %1578 = sbr.rel (0) target = $region41
    $region40: #{tpu_custom_call.1} parent=1 // pred_region
      %1579 = dma.done [#allocation6], 32
    $region41: #{tpu_custom_call.1} parent=1 // pred_fallthru
      _
    %1580 = vsyncpa [#allocation5], 1
    %1581 = vsyncpa [#allocation8], 1
    %1582 = vsyncpa [#allocation6], 1

</llo_original>
